<compile_context>
chip_gen: v7x
topology: tpu7x:2x2x1
jax: 0.10.0
libtpu: 0.0.40
codegen_flags: <defaults>
</compile_context>

<pallas_src>
import functools

import jax
import jax.numpy as jnp
from jax.experimental import pallas as pl
from jax.experimental.pallas import tpu as pltpu


# ----------------------------------------------------------------------------
# Kernel 1: fused (vision + text) encoder towers + compression heads.
# Grid: (tower, batch_tile); both axes "parallel".
#   counts  : [2] int32 (scalar prefetch, SMEM) — true token count per tower
#   feat    : [2, B_pad*T_pad, F_in] bf16       — flattened (batch, token) rows
#   w1,b1   : [2, F_in, H] bf16, [2, 1, H] f32  — embedding linear
#   wproj   : [2, H, D] bf16                    — projection to CLIP embed dim
#   wh,bh   : [2, D, Dc] bf16, [2, 1, Dc] f32   — compression head
#   emb     : [2, B_pad, D]  f32  L2-normalized full embedding
#   comp    : [2, B_pad, Dc] f32  L2-normalized compressed embedding
# ----------------------------------------------------------------------------
def _towers_kernel(tile_b, t_pad,
                   counts_ref, feat_ref, w1_ref, b1_ref, wproj_ref,
                   whead_ref, bhead_ref, emb_ref, comp_ref):
    tower = pl.program_id(0)
    n_valid = counts_ref[tower]                         # true token count (SMEM)
    h_dim = w1_ref.shape[2]

    feat = feat_ref[0]                                  # [TILE_B*T_pad, F_in] bf16
    # Embedding matmul on the MXU with M = TILE_B*T_pad sublane-dense rows,
    # f32 accumulation.
    h = jnp.dot(feat, w1_ref[0],
                preferred_element_type=jnp.float32) + b1_ref[0]     # [M, H] f32
    # TODO(synk): torch nn.GELU is exact erf; jax.nn.gelu default is tanh-approx.
    h = jax.nn.gelu(h)

    # Masked mean pooling: XLU sublane reduce over the zero-padded token axis
    # (T_pad is a multiple of 8, so the reshape is layout-friendly), divided by
    # the true per-tower token count.
    h3 = h.reshape(tile_b, t_pad, h_dim)                # [TILE_B, T_pad, H] f32
    tok_idx = jax.lax.broadcasted_iota(jnp.int32, h3.shape, 1)
    h3 = jnp.where(tok_idx < n_valid, h3, 0.0)
    pooled = jnp.sum(h3, axis=1) / n_valid.astype(jnp.float32)      # [TILE_B, H]

    emb = jnp.dot(pooled.astype(jnp.bfloat16), wproj_ref[0],
                  preferred_element_type=jnp.float32)               # [TILE_B, D]
    inv = jax.lax.rsqrt(
        jnp.maximum(jnp.sum(emb * emb, axis=-1, keepdims=True), 1e-24))
    emb_n = emb * inv                                               # L2 normalize
    emb_ref[0] = emb_n

    # Fused compression head + parse_head_output (F.normalize(dim=-1)).
    c = jnp.dot(emb_n.astype(jnp.bfloat16), whead_ref[0],
                preferred_element_type=jnp.float32) + bhead_ref[0]  # [TILE_B, Dc]
    inv_c = jax.lax.rsqrt(
        jnp.maximum(jnp.sum(c * c, axis=-1, keepdims=True), 1e-24))
    comp_ref[0] = c * inv_c


def pallas_encode_towers(feat_all, counts, w1_all, b1_all, wproj_all,
                         whead_all, bhead_all, *, tile_b, t_pad):
    n_tower, m_total, f_in = feat_all.shape
    b_pad = m_total // t_pad
    h_dim = w1_all.shape[2]
    d = wproj_all.shape[2]
    dc = whead_all.shape[2]
    m_tile = tile_b * t_pad
    assert b_pad % tile_b == 0 and m_tile % 8 == 0 and f_in % 128 == 0

    kernel = functools.partial(_towers_kernel, tile_b, t_pad)
    emb_all, comp_all = pl.pallas_call(
        kernel,
        out_shape=(jax.ShapeDtypeStruct((n_tower, b_pad, d), jnp.float32),
                   jax.ShapeDtypeStruct((n_tower, b_pad, dc), jnp.float32)),
        grid_spec=pltpu.PrefetchScalarGridSpec(
            num_scalar_prefetch=1,            # counts -> SMEM before the grid
            grid=(n_tower, b_pad // tile_b),
            in_specs=[
                # Activations: one (TILE_B*T_pad, F_in) slab per step.
                pl.BlockSpec((1, m_tile, f_in), lambda i, j, cnt: (i, j, 0)),
                # Per-tower weights (constant along the batch-tile axis).
                # TODO(synk): at real ViT-B/32 sizes add
                # pipeline_mode=pl.Buffered(1) to these constant-index weight
                # specs (esp. v7x's 64 MiB VMEM) and set vmem_limit_bytes when
                # raising TILE_B.
                pl.BlockSpec((1, f_in, h_dim), lambda i, j, cnt: (i, 0, 0)),
                pl.BlockSpec((1, 1, h_dim), lambda i, j, cnt: (i, 0, 0)),
                pl.BlockSpec((1, h_dim, d), lambda i, j, cnt: (i, 0, 0)),
                pl.BlockSpec((1, d, dc), lambda i, j, cnt: (i, 0, 0)),
                pl.BlockSpec((1, 1, dc), lambda i, j, cnt: (i, 0, 0)),
            ],
            out_specs=[
                pl.BlockSpec((1, tile_b, d), lambda i, j, cnt: (i, j, 0)),
                pl.BlockSpec((1, tile_b, dc), lambda i, j, cnt: (i, j, 0)),
            ],
        ),
        compiler_params=pltpu.CompilerParams(
            # Tower axis -> the two TensorCores on v7x; no-op on v5e/v6e.
            dimension_semantics=("parallel", "parallel")),
    )(counts, feat_all, w1_all, b1_all, wproj_all, whead_all, bhead_all)
    return emb_all, comp_all


# ----------------------------------------------------------------------------
# Kernel 2: symmetric contrastive (InfoNCE) loss on compressed embeddings.
#   img, txt : [B, Dc] f32 (already L2-normalized), scale : (1,1) SMEM scalar
#   loss     : (1,1) f32
# ----------------------------------------------------------------------------
def _clip_loss_kernel(img_ref, txt_ref, scale_ref, loss_ref):
    scale = scale_ref[0, 0]
    # logits[i, j] = scale * <img_i, txt_j>; f32 MXU pass (no bf16 cast of the
    # already-normalized embeddings -> parity with the torch f32 reference).
    logits = scale * jax.lax.dot_general(
        img_ref[...], txt_ref[...], (((1,), (1,)), ((), ())),
        preferred_element_type=jnp.float32)                           # [B, B]
    bsz = logits.shape[0]
    row = jax.lax.broadcasted_iota(jnp.int32, (bsz, bsz), 0)
    col = jax.lax.broadcasted_iota(jnp.int32, (bsz, bsz), 1)
    diag = row == col

    def ce(lg, axis):
        m = jnp.max(lg, axis=axis, keepdims=True)
        lse = jnp.log(jnp.sum(jnp.exp(lg - m), axis=axis, keepdims=True)) + m
        logp = lg - lse
        nll = -jnp.sum(jnp.where(diag, logp, 0.0), axis=axis, keepdims=True)
        return jnp.sum(nll, axis=1 - axis, keepdims=True) / bsz        # (1, 1)

    # TODO(synk): at real CLIP batch sizes tile the row axis with an online LSE
    # (txt resident, second pass / column accumulator for the transposed CE)
    # instead of materializing the full [B, B] f32 logits in VMEM.
    loss_ref[...] = 0.5 * (ce(logits, axis=1) + ce(logits, axis=0))


def pallas_clip_loss(img_c, txt_c, logit_scale_exp):
    scale = jnp.asarray(logit_scale_exp, jnp.float32).reshape(1, 1)
    return pl.pallas_call(
        _clip_loss_kernel,
        out_shape=jax.ShapeDtypeStruct((1, 1), jnp.float32),
        in_specs=[
            pl.BlockSpec(memory_space=pltpu.MemorySpace.VMEM),
            pl.BlockSpec(memory_space=pltpu.MemorySpace.VMEM),
            pl.BlockSpec(memory_space=pltpu.MemorySpace.SMEM),
        ],
        out_specs=pl.BlockSpec(memory_space=pltpu.MemorySpace.VMEM),
    )(img_c, txt_c, scale)


# ----------------------------------------------------------------------------
# Model glue (parameter setup, patch extraction, token gather, forward pass).
# All feature dims are multiples of 128 (lane-dense vregs, full MXU tiles).
# ----------------------------------------------------------------------------
def init_params(key, *, channels=4, patch=8, vision_hidden=128, embed_dim=256,
                vocab=64, tok_dim=256, text_hidden=128, compressed_dim=128):
    assert channels * patch * patch == tok_dim      # fused-tower weight stack
    assert vision_hidden == text_hidden
    ks = jax.random.split(key, 8)
    s = 0.02
    bf = jnp.bfloat16
    p = {
        # vision tower
        "w_patch": (jax.random.normal(ks[0], (channels * patch * patch, vision_hidden), jnp.float32) * s).astype(bf),
        "b_patch": jnp.zeros((1, vision_hidden), jnp.float32),
        "w_vproj": (jax.random.normal(ks[1], (vision_hidden, embed_dim), jnp.float32) * s).astype(bf),
        # text tower (bf16 table so the gather emits bf16 directly)
        "tok_embed": (jax.random.normal(ks[2], (vocab, tok_dim), jnp.float32) * s).astype(bf),
        "w_text": (jax.random.normal(ks[3], (tok_dim, text_hidden), jnp.float32) * s).astype(bf),
        "b_text": jnp.zeros((1, text_hidden), jnp.float32),
        "w_tproj": (jax.random.normal(ks[4], (text_hidden, embed_dim), jnp.float32) * s).astype(bf),
        # heads (compress embed_dim -> compressed_dim < embed_dim)
        "w_ihead": (jax.random.normal(ks[5], (embed_dim, compressed_dim), jnp.float32) * s).astype(bf),
        "b_ihead": jnp.zeros((1, compressed_dim), jnp.float32),
        "w_thead": (jax.random.normal(ks[6], (embed_dim, compressed_dim), jnp.float32) * s).astype(bf),
        "b_thead": jnp.zeros((1, compressed_dim), jnp.float32),
        # CLIP logit scale, open_clip init: ln(1/0.07)
        "logit_scale": jnp.asarray(jnp.log(1.0 / 0.07), jnp.float32),
    }
    return p


def _extract_patches_nchw(pixel_values, patch):
    # NCHW -> [B, num_patches, C * P * P], channel-first per-patch flatten
    # (matches a Conv2d patch-embed with kernel=stride=P).
    b, c, h, w = pixel_values.shape
    hp, wp = h // patch, w // patch
    x = pixel_values.reshape(b, c, hp, patch, wp, patch)
    x = x.transpose(0, 2, 4, 1, 3, 5)                  # B, Hp, Wp, C, P, P
    return x.reshape(b, hp * wp, c * patch * patch)


def clip_for_compressed_embed_forward(params, input_ids, pixel_values,
                                      *, patch=8, tile_b=8, return_loss=True):
    b = pixel_values.shape[0]
    embed_dim = params["w_vproj"].shape[1]

    # ---- self.clip(image=pixel_values, text=input_ids) + fused heads --------
    patches = _extract_patches_nchw(pixel_values, patch).astype(jnp.bfloat16)   # [B,Tv,F]
    # TODO(synk): at real vocab/seq sizes fold this gather into the kernel via
    # PrefetchScalarGridSpec(input_ids) + pl.Element row-gather BlockSpec.
    tok = jnp.take(params["tok_embed"], input_ids, axis=0)                      # [B,S,F] bf16

    t_v, t_s = patches.shape[1], tok.shape[1]
    t_pad = -(-max(t_v, t_s) // 8) * 8          # token axis -> multiple of 8
    tile_b = max(8, tile_b)                     # sublane-dense output tiles
    b_pad = -(-b // tile_b) * tile_b            # batch -> multiple of TILE_B

    def _prep(x):                               # zero-pad batch/tokens, flatten rows
        xb, xt, xf = x.shape
        x = jnp.pad(x, ((0, b_pad - xb), (0, t_pad - xt), (0, 0)))
        return x.reshape(b_pad * t_pad, xf)

    feat_all = jnp.stack([_prep(patches), _prep(tok)], axis=0)    # [2, Bp*Tp, F] bf16
    counts = jnp.array([t_v, t_s], jnp.int32)

    w1_all = jnp.stack([params["w_patch"], params["w_text"]], axis=0)
    b1_all = jnp.stack([params["b_patch"], params["b_text"]], axis=0)
    wproj_all = jnp.stack([params["w_vproj"], params["w_tproj"]], axis=0)
    whead_all = jnp.stack([params["w_ihead"], params["w_thead"]], axis=0)
    bhead_all = jnp.stack([params["b_ihead"], params["b_thead"]], axis=0)

    emb_all, comp_all = pallas_encode_towers(
        feat_all, counts, w1_all, b1_all, wproj_all, whead_all, bhead_all,
        tile_b=tile_b, t_pad=t_pad)

    image_embeds = emb_all[0, :b]
    text_embeds = emb_all[1, :b]
    image_embeds_compressed = comp_all[0, :b]
    text_embeds_compressed = comp_all[1, :b]

    # parse_head_output asserts (F.normalize already fused into the kernel)
    assert image_embeds_compressed.shape[-1] < embed_dim
    assert text_embeds_compressed.shape[-1] < embed_dim

    logit_scale_exp = jnp.exp(params["logit_scale"])

    # ---- optional loss -------------------------------------------------------
    loss = None
    if return_loss:
        loss = pallas_clip_loss(image_embeds_compressed,
                                text_embeds_compressed,
                                logit_scale_exp)[0, 0]

    # Mirrors the torch module's non-return_dict tuple:
    # (loss,) + (logits_per_image, logits_per_text, text_embeds, image_embeds,
    #            text_outputs, vision_outputs)
    logits_per_image, logits_per_text = None, None
    text_outputs, vision_outputs = None, None
    output = (logits_per_image, logits_per_text, text_embeds, image_embeds,
              text_outputs, vision_outputs)
    return (loss,) + output if loss is not None else output


# ----------------------------------------------------------------------------
if __name__ == "__main__":
    key = jax.random.PRNGKey(0)
    k_param, k_pix, k_ids = jax.random.split(key, 3)

    B, C, H, W = 2, 4, 16, 16
    S, VOCAB = 8, 64
    EMBED_DIM, COMPRESSED_DIM = 256, 128

    params = init_params(k_param, channels=C, patch=8,
                         vocab=VOCAB, embed_dim=EMBED_DIM,
                         compressed_dim=COMPRESSED_DIM)
    pixel_values = jax.random.normal(k_pix, (B, C, H, W), jnp.float32)   # NCHW
    input_ids = jax.random.randint(k_ids, (B, S), 0, VOCAB, jnp.int32)

    out = clip_for_compressed_embed_forward(params, input_ids, pixel_values,
                                            return_loss=True)
    loss, _, _, text_embeds, image_embeds, _, _ = out

    jax.block_until_ready((loss, text_embeds, image_embeds))
    assert image_embeds.shape == (B, EMBED_DIM)
    assert text_embeds.shape == (B, EMBED_DIM)
    assert bool(jnp.isfinite(loss))
    assert bool(jnp.all(jnp.isfinite(image_embeds)))
    assert bool(jnp.all(jnp.isfinite(text_embeds)))
    print("KERNEL_OK")
</pallas_src>

<mosaic_0001>
module attributes {stable_mosaic.version = 11 : i64} {
  func.func @_towers_kernel(%arg0: i32, %arg1: i32, %arg2: memref<2xi32, #tpu.memory_space<smem>>, %arg3: memref<1x64x256xbf16, #tpu.memory_space<vmem>>, %arg4: memref<1x256x128xbf16, #tpu.memory_space<vmem>>, %arg5: memref<1x1x128xf32, #tpu.memory_space<vmem>>, %arg6: memref<1x128x256xbf16, #tpu.memory_space<vmem>>, %arg7: memref<1x256x128xbf16, #tpu.memory_space<vmem>>, %arg8: memref<1x1x128xf32, #tpu.memory_space<vmem>>, %arg9: memref<1x8x256xf32, #tpu.memory_space<vmem>>, %arg10: memref<1x8x128xf32, #tpu.memory_space<vmem>>) attributes {dimension_semantics = [#tpu.dimension_semantics<parallel>, #tpu.dimension_semantics<parallel>], iteration_bounds = array<i64: 2, 1>, scalar_prefetch = 1 : i64, scratch_operands = 0 : i64, tpu.core_type = #tpu.core_type<tc>, window_params = [{transform_indices = @transform_0, window_bounds = array<i64: 1, 64, 256>}, {transform_indices = @transform_1, window_bounds = array<i64: 1, 256, 128>}, {transform_indices = @transform_2, window_bounds = array<i64: 1, 1, 128>}, {transform_indices = @transform_3, window_bounds = array<i64: 1, 128, 256>}, {transform_indices = @transform_4, window_bounds = array<i64: 1, 256, 128>}, {transform_indices = @transform_5, window_bounds = array<i64: 1, 1, 128>}, {transform_indices = @transform_6, window_bounds = array<i64: 1, 8, 256>}, {transform_indices = @transform_7, window_bounds = array<i64: 1, 8, 128>}]} {
    %0 = arith.index_cast %arg0 : i32 to index
    %1 = memref.load %arg2[%0] : memref<2xi32, #tpu.memory_space<smem>>
    %c0 = arith.constant 0 : index
    %c0_0 = arith.constant 0 : index
    %c0_1 = arith.constant 0 : index
    %2 = vector.load %arg3[%c0, %c0_0, %c0_1] : memref<1x64x256xbf16, #tpu.memory_space<vmem>>, vector<1x64x256xbf16>
    %3 = vector.shape_cast %2 : vector<1x64x256xbf16> to vector<64x256xbf16>
    %c0_2 = arith.constant 0 : index
    %c0_3 = arith.constant 0 : index
    %c0_4 = arith.constant 0 : index
    %4 = vector.load %arg4[%c0_2, %c0_3, %c0_4] : memref<1x256x128xbf16, #tpu.memory_space<vmem>>, vector<1x256x128xbf16>
    %5 = vector.shape_cast %4 : vector<1x256x128xbf16> to vector<256x128xbf16>
    %cst = arith.constant dense<0.000000e+00> : vector<64x128xf32>
    %6 = tpu.matmul %3, %5, %cst {dimension_numbers = #tpu.dot_dimension_numbers<[1], [0], [0], [1], [0, 0, 1, 1], [], []>} : vector<64x256xbf16>, vector<256x128xbf16>, vector<64x128xf32> -> vector<64x128xf32>
    %c0_5 = arith.constant 0 : index
    %c0_6 = arith.constant 0 : index
    %c0_7 = arith.constant 0 : index
    %7 = vector.load %arg5[%c0_5, %c0_6, %c0_7] : memref<1x1x128xf32, #tpu.memory_space<vmem>>, vector<1x1x128xf32>
    %8 = vector.shape_cast %7 : vector<1x1x128xf32> to vector<1x128xf32>
    %9 = vector.broadcast %8 : vector<1x128xf32> to vector<64x128xf32>
    %10 = arith.addf %6, %9 : vector<64x128xf32>
    %11 = arith.mulf %10, %10 : vector<64x128xf32>
    %12 = arith.mulf %10, %11 : vector<64x128xf32>
    %cst_8 = arith.constant 4.471500e-02 : f32
    %13 = vector.broadcast %cst_8 : f32 to vector<64x128xf32>
    %14 = arith.mulf %13, %12 : vector<64x128xf32>
    %15 = arith.addf %10, %14 : vector<64x128xf32>
    %cst_9 = arith.constant 0.797884583 : f32
    %16 = vector.broadcast %cst_9 : f32 to vector<64x128xf32>
    %17 = arith.mulf %16, %15 : vector<64x128xf32>
    %18 = math.tanh %17 : vector<64x128xf32>
    %cst_10 = arith.constant 1.000000e+00 : f32
    %19 = vector.broadcast %cst_10 : f32 to vector<64x128xf32>
    %20 = arith.addf %19, %18 : vector<64x128xf32>
    %cst_11 = arith.constant 5.000000e-01 : f32
    %21 = vector.broadcast %cst_11 : f32 to vector<64x128xf32>
    %22 = arith.mulf %21, %20 : vector<64x128xf32>
    %23 = arith.mulf %10, %22 : vector<64x128xf32>
    %24 = vector.shape_cast %23 : vector<64x128xf32> to vector<8x8x128xf32>
    %25 = tpu.iota {dimensions = array<i32: 1>} : vector<8x8x128xi32>
    %26 = vector.broadcast %1 : i32 to vector<8x8x128xi32>
    %27 = arith.cmpi slt, %25, %26 : vector<8x8x128xi32>
    %cst_12 = arith.constant 0.000000e+00 : f32
    %28 = vector.broadcast %cst_12 : f32 to vector<8x8x128xf32>
    %29 = arith.select %27, %24, %28 : vector<8x8x128xi1>, vector<8x8x128xf32>
    %cst_13 = arith.constant dense<0.000000e+00> : vector<8x128xf32>
    %30 = vector.multi_reduction <add>, %29, %cst_13 [1] : vector<8x8x128xf32> to vector<8x128xf32>
    %31 = arith.sitofp %1 : i32 to f32
    %32 = vector.broadcast %31 : f32 to vector<8x128xf32>
    %33 = arith.divf %30, %32 : vector<8x128xf32>
    %34 = arith.truncf %33 : vector<8x128xf32> to vector<8x128xbf16>
    %c0_14 = arith.constant 0 : index
    %c0_15 = arith.constant 0 : index
    %c0_16 = arith.constant 0 : index
    %35 = vector.load %arg6[%c0_14, %c0_15, %c0_16] : memref<1x128x256xbf16, #tpu.memory_space<vmem>>, vector<1x128x256xbf16>
    %36 = vector.shape_cast %35 : vector<1x128x256xbf16> to vector<128x256xbf16>
    %cst_17 = arith.constant dense<0.000000e+00> : vector<8x256xf32>
    %37 = tpu.matmul %34, %36, %cst_17 {dimension_numbers = #tpu.dot_dimension_numbers<[1], [0], [0], [1], [0, 0, 1, 1], [], []>} : vector<8x128xbf16>, vector<128x256xbf16>, vector<8x256xf32> -> vector<8x256xf32>
    %38 = arith.mulf %37, %37 : vector<8x256xf32>
    %cst_18 = arith.constant dense<0.000000e+00> : vector<8xf32>
    %39 = vector.multi_reduction <add>, %38, %cst_18 [1] : vector<8x256xf32> to vector<8xf32>
    %40 = vector.shape_cast %39 : vector<8xf32> to vector<8x1xf32>
    %cst_19 = arith.constant 1.000000e-24 : f32
    %41 = vector.broadcast %cst_19 : f32 to vector<8x1xf32>
    %42 = arith.maximumf %40, %41 : vector<8x1xf32>
    %43 = math.rsqrt %42 : vector<8x1xf32>
    %44 = vector.broadcast %43 : vector<8x1xf32> to vector<8x256xf32>
    %45 = arith.mulf %37, %44 : vector<8x256xf32>
    %c0_20 = arith.constant 0 : index
    %c0_21 = arith.constant 0 : index
    %c0_22 = arith.constant 0 : index
    %46 = vector.load %arg9[%c0_20, %c0_21, %c0_22] : memref<1x8x256xf32, #tpu.memory_space<vmem>>, vector<1x8x256xf32>
    %47 = vector.shape_cast %46 : vector<1x8x256xf32> to vector<8x256xf32>
    %48 = vector.shape_cast %45 : vector<8x256xf32> to vector<1x8x256xf32>
    tpu.vector_store %arg9[%c0_20, %c0_21, %c0_22], %48 {strides = array<i32>} : memref<1x8x256xf32, #tpu.memory_space<vmem>>, vector<1x8x256xf32>,
    %49 = arith.truncf %45 : vector<8x256xf32> to vector<8x256xbf16>
    %c0_23 = arith.constant 0 : index
    %c0_24 = arith.constant 0 : index
    %c0_25 = arith.constant 0 : index
    %50 = vector.load %arg7[%c0_23, %c0_24, %c0_25] : memref<1x256x128xbf16, #tpu.memory_space<vmem>>, vector<1x256x128xbf16>
    %51 = vector.shape_cast %50 : vector<1x256x128xbf16> to vector<256x128xbf16>
    %cst_26 = arith.constant dense<0.000000e+00> : vector<8x128xf32>
    %52 = tpu.matmul %49, %51, %cst_26 {dimension_numbers = #tpu.dot_dimension_numbers<[1], [0], [0], [1], [0, 0, 1, 1], [], []>} : vector<8x256xbf16>, vector<256x128xbf16>, vector<8x128xf32> -> vector<8x128xf32>
    %c0_27 = arith.constant 0 : index
    %c0_28 = arith.constant 0 : index
    %c0_29 = arith.constant 0 : index
    %53 = vector.load %arg8[%c0_27, %c0_28, %c0_29] : memref<1x1x128xf32, #tpu.memory_space<vmem>>, vector<1x1x128xf32>
    %54 = vector.shape_cast %53 : vector<1x1x128xf32> to vector<1x128xf32>
    %55 = vector.broadcast %54 : vector<1x128xf32> to vector<8x128xf32>
    %56 = arith.addf %52, %55 : vector<8x128xf32>
    %57 = arith.mulf %56, %56 : vector<8x128xf32>
    %cst_30 = arith.constant dense<0.000000e+00> : vector<8xf32>
    %58 = vector.multi_reduction <add>, %57, %cst_30 [1] : vector<8x128xf32> to vector<8xf32>
    %59 = vector.shape_cast %58 : vector<8xf32> to vector<8x1xf32>
    %cst_31 = arith.constant 1.000000e-24 : f32
    %60 = vector.broadcast %cst_31 : f32 to vector<8x1xf32>
    %61 = arith.maximumf %59, %60 : vector<8x1xf32>
    %62 = math.rsqrt %61 : vector<8x1xf32>
    %63 = vector.broadcast %62 : vector<8x1xf32> to vector<8x128xf32>
    %64 = arith.mulf %56, %63 : vector<8x128xf32>
    %c0_32 = arith.constant 0 : index
    %c0_33 = arith.constant 0 : index
    %c0_34 = arith.constant 0 : index
    %65 = vector.load %arg10[%c0_32, %c0_33, %c0_34] : memref<1x8x128xf32, #tpu.memory_space<vmem>>, vector<1x8x128xf32>
    %66 = vector.shape_cast %65 : vector<1x8x128xf32> to vector<8x128xf32>
    %67 = vector.shape_cast %64 : vector<8x128xf32> to vector<1x8x128xf32>
    tpu.vector_store %arg10[%c0_32, %c0_33, %c0_34], %67 {strides = array<i32>} : memref<1x8x128xf32, #tpu.memory_space<vmem>>, vector<1x8x128xf32>,
    return
  }
  func.func @transform_0(%arg0: i32, %arg1: i32, %arg2: memref<2xi32, #tpu.memory_space<smem>>) -> (i32, i32, i32) {
    %c0_i32 = arith.constant 0 : i32
    %c0_i32_0 = arith.constant 0 : i32
    return %arg0, %arg1, %c0_i32 : i32, i32, i32
  }
  func.func @transform_1(%arg0: i32, %arg1: i32, %arg2: memref<2xi32, #tpu.memory_space<smem>>) -> (i32, i32, i32) {
    %c0_i32 = arith.constant 0 : i32
    %c0_i32_0 = arith.constant 0 : i32
    %c0_i32_1 = arith.constant 0 : i32
    return %arg0, %c0_i32, %c0_i32_0 : i32, i32, i32
  }
  func.func @transform_2(%arg0: i32, %arg1: i32, %arg2: memref<2xi32, #tpu.memory_space<smem>>) -> (i32, i32, i32) {
    %c0_i32 = arith.constant 0 : i32
    %c0_i32_0 = arith.constant 0 : i32
    %c0_i32_1 = arith.constant 0 : i32
    return %arg0, %c0_i32, %c0_i32_0 : i32, i32, i32
  }
  func.func @transform_3(%arg0: i32, %arg1: i32, %arg2: memref<2xi32, #tpu.memory_space<smem>>) -> (i32, i32, i32) {
    %c0_i32 = arith.constant 0 : i32
    %c0_i32_0 = arith.constant 0 : i32
    %c0_i32_1 = arith.constant 0 : i32
    return %arg0, %c0_i32, %c0_i32_0 : i32, i32, i32
  }
  func.func @transform_4(%arg0: i32, %arg1: i32, %arg2: memref<2xi32, #tpu.memory_space<smem>>) -> (i32, i32, i32) {
    %c0_i32 = arith.constant 0 : i32
    %c0_i32_0 = arith.constant 0 : i32
    %c0_i32_1 = arith.constant 0 : i32
    return %arg0, %c0_i32, %c0_i32_0 : i32, i32, i32
  }
  func.func @transform_5(%arg0: i32, %arg1: i32, %arg2: memref<2xi32, #tpu.memory_space<smem>>) -> (i32, i32, i32) {
    %c0_i32 = arith.constant 0 : i32
    %c0_i32_0 = arith.constant 0 : i32
    %c0_i32_1 = arith.constant 0 : i32
    return %arg0, %c0_i32, %c0_i32_0 : i32, i32, i32
  }
  func.func @transform_6(%arg0: i32, %arg1: i32, %arg2: memref<2xi32, #tpu.memory_space<smem>>) -> (i32, i32, i32) {
    %c0_i32 = arith.constant 0 : i32
    %c0_i32_0 = arith.constant 0 : i32
    return %arg0, %arg1, %c0_i32 : i32, i32, i32
  }
  func.func @transform_7(%arg0: i32, %arg1: i32, %arg2: memref<2xi32, #tpu.memory_space<smem>>) -> (i32, i32, i32) {
    %c0_i32 = arith.constant 0 : i32
    %c0_i32_0 = arith.constant 0 : i32
    return %arg0, %arg1, %c0_i32 : i32, i32, i32
  }
}

</mosaic_0001>

<llo_original>
// kernel: tpu_custom_call.1
$region0: #{tpu_custom_call.1}
  #allocation0 [shape = 'u32[]', space=smem, size = 0x4, offset = 0x4, fixed_abs, tag = 'smem constant byte address 0x4 - core index']
  #allocation1 [shape = 'u32[144,128]{1,0:T(1,128)}', space=vmem, size = 0x12000, scoped, tag = 'internal scratch']
  #allocation2 [shape = 's32[1]{0}', space=sflag, size = 0x4, scoped, tag = 'scoped memory for tpu_custom_call.1']
  #allocation3 [shape = 'u8[512]{0}', space=smem, size = 0x200, scoped, tag = 'prefetched SMEM operand 0']
  %s0 = inlined_call_operand.hbm [shape: s32[2], index: 0, kind: input, shape index: {}]
  %s1 = inlined_call_operand.hbm [shape: bf16[2,64,256], index: 1, kind: input, shape index: {}]
  %s2 = inlined_call_operand.hbm [shape: bf16[2,256,128], index: 2, kind: input, shape index: {}]
  %s3 = inlined_call_operand.vmem [shape: f32[2,1,128], index: 3, kind: input, shape index: {}]
  %s4 = inlined_call_operand.hbm [shape: bf16[2,128,256], index: 4, kind: input, shape index: {}]
  %s5 = inlined_call_operand.hbm [shape: bf16[2,256,128], index: 5, kind: input, shape index: {}]
  %s6 = inlined_call_operand.vmem [shape: f32[2,1,128], index: 6, kind: input, shape index: {}]
  %s7 = inlined_call_operand.hbm [shape: f32[2,8,256], index: 7, kind: output, shape index: {0}]
  %s8 = inlined_call_operand.hbm [shape: f32[2,8,128], index: 8, kind: output, shape index: {1}]
  %9 = xla_tuple %s7, %s8
  %s10 = sld [smem:[#allocation0]]
  $region81: #{tpu_custom_call.1} parent=0
    _
  %s12 = ssub.s32 1, %s10
  %s13 = scalar_select 0, %s12, %s10
  %15 = dma.hbm_to_smem %s0, 16, [#allocation3], [#allocation2]
  %16 = dma.done [#allocation2], 16
  %17 = sfence
  $region1: #{tpu_custom_call.1} parent=0
    #allocation4 [shape = 'u8[65536]{0}', space=vmem, size = 0x10000, scoped, tag = 'input window, operand 1']
    #allocation5 [shape = 's32[2]{0}', space=sflag, size = 0x8, scoped, tag = 'scoped memory for tpu_custom_call.1']
    #allocation6 [shape = 's32[2]{0}', space=sflag, size = 0x8, scoped, tag = 'scoped memory for tpu_custom_call.1']
    #allocation7 [shape = 'u8[131072]{0}', space=vmem, size = 0x20000, scoped, tag = 'input window, operand 2']
    #allocation8 [shape = 's32[2]{0}', space=sflag, size = 0x8, scoped, tag = 'scoped memory for tpu_custom_call.1']
    #allocation9 [shape = 'u8[131072]{0}', space=vmem, size = 0x20000, scoped, tag = 'input window, operand 4']
    #allocation10 [shape = 'u8[131072]{0}', space=vmem, size = 0x20000, scoped, tag = 'input window, operand 5']
    #allocation11 [shape = 's32[2]{0}', space=sflag, size = 0x8, scoped, tag = 'scoped memory for tpu_custom_call.1']
    #allocation12 [shape = 'u8[16384]{0}', space=vmem, size = 0x4000, scoped, tag = 'output window, operand 0']
    #allocation13 [shape = 'u8[8192]{0}', space=vmem, size = 0x2000, scoped, tag = 'output window, operand 1']
    #allocation14 [shape = 's32[2]{0}', space=sflag, size = 0x8, scoped, tag = 'scoped memory for tpu_custom_call.1']
    %18 = vsyncpa [#allocation5], 0
    %s19 = scalar_lea.sflag [#allocation5], 1
    %20 = vsyncpa %s19, 0
    %21 = vsyncpa [#allocation8], 0
    %s22 = scalar_lea.sflag [#allocation8], 1
    %23 = vsyncpa %s22, 0
    %24 = vsyncpa [#allocation11], 0
    %s25 = scalar_lea.sflag [#allocation11], 1
    %26 = vsyncpa %s25, 0
    %27 = vsyncpa [#allocation6], 0
    %s28 = scalar_lea.sflag [#allocation6], 1
    %29 = vsyncpa %s28, 0
    %30 = vsyncpa [#allocation14], 0
    %s31 = scalar_lea.sflag [#allocation14], 1
    %32 = vsyncpa %s31, 0
    loop: start=0, step=1, limit=4
    $region2: #{tpu_custom_call.1} parent=1 // loop_pre_header
      _
    $region3: #{tpu_custom_call.1} parent=1 // loop_header
      %s34 = sphi 0, %s38
      %p35 = scmp.ge.s32.totalorder %s34, 4
      %s41 = sphi 0, %s53
      %s42 = sphi 0, %s49
      %s43 = sphi 0, %s41
      %s44 = sphi 0, %s42
      %s45 = sphi 0, %s43
      %s46 = sphi 0, %s44
      %s58 = sphi 0, %s60
      %s61 = sphi 0, %s58
      %s62 = sphi 0, %s61
      %s78 = sphi 0, %s62
      %s84 = sphi 0, %s86
      %s87 = sphi 0, %s84
      %s88 = sphi 0, %s87
      %s104 = sphi 0, %s88
      %s110 = sphi 0, %s112
      %s113 = sphi 0, %s110
      %s114 = sphi 0, %s113
      %s130 = sphi 0, %s114
      %s136 = sphi 0, %s138
      %s139 = sphi 0, %s136
      %s140 = sphi 0, %s139
      %s156 = sphi 0, %s140
      %s162 = sphi 0, %s164
      %s165 = sphi 0, %s162
      %s166 = sphi 0, %s165
      %s182 = sphi 0, %s166
      %s188 = sphi 0, %s190
      %s191 = sphi 0, %s188
      %s192 = sphi 0, %s191
      %s208 = sphi 0, %s192
      %s216 = sphi 0, %s218
      %s219 = sphi 0, %s216
      %s220 = sphi 0, %s219
      %s236 = sphi 0, %s220
      %s244 = sphi 0, %s246
      %s247 = sphi 0, %s244
      %s248 = sphi 0, %s247
      %s264 = sphi 0, %s248
    $region4: #{tpu_custom_call.1} parent=1 // loop_header_branch
      %37 = sbr.rel (%p35) target = $region8
    $region5: #{tpu_custom_call.1} parent=1 // loop_body
      %s39 = ssub.s32 %s34, 1
      %s40 = ssub.s32 %s34, 2
      %s47 = sadd.s32 1, %s42
      %p48 = scmp.ge.s32.totalorder %s47, 1
      %s49 = scalar_select %p48, 0, %s47
      %s50 = sadd.s32 1, %s41
      %s51 = scalar_select %p48, %s50, %s41
      %p52 = scmp.ge.s32.totalorder %s51, 2
      %s53 = scalar_select %p52, 0, %s51
      %s54 = ssub.s32 %s41, %s53
      %s55 = ssub.s32 %s42, %s49
      %s56 = sor.u32 %s54, %s55
      %p57 = scmp.eq.s32.totalorder %s56, 0
      %s59 = sadd.s32 %s58, 1
      %s60 = scalar_select %p57, %s58, %s59
      %p63 = pneg %p57
      %p64 = scmp.eq.s32.totalorder %s34, 1
      %p65 = por %p63, %p64
      %p66 = scmp.ne.s32.totalorder %s58, %s61
      %p67 = scmp.eq.s32.totalorder %s34, 0
      %p68 = por %p66, %p67
      %p69 = scmp.ne.s32.totalorder %s58, %s61
      %p70 = scmp.eq.s32.totalorder %s39, 1
      %p71 = por %p69, %p70
      %p72 = scmp.ne.s32.totalorder %s61, %s62
      %p73 = scmp.eq.s32.totalorder %s39, 0
      %p74 = por %p72, %p73
      %p75 = scmp.ne.s32.totalorder %s61, %s62
      %p76 = scmp.eq.s32.totalorder %s40, 1
      %p77 = por %p75, %p76
      %p79 = scmp.ne.s32.totalorder %s62, %s78
      %p80 = scmp.eq.s32.totalorder %s40, 0
      %p81 = por %p79, %p80
      %s82 = ssub.s32 %s41, %s53
      %p83 = scmp.eq.s32.totalorder %s82, 0
      %s85 = sadd.s32 %s84, 1
      %s86 = scalar_select %p83, %s84, %s85
      %p89 = pneg %p83
      %p90 = scmp.eq.s32.totalorder %s34, 1
      %p91 = por %p89, %p90
      %p92 = scmp.ne.s32.totalorder %s84, %s87
      %p93 = scmp.eq.s32.totalorder %s34, 0
      %p94 = por %p92, %p93
      %p95 = scmp.ne.s32.totalorder %s84, %s87
      %p96 = scmp.eq.s32.totalorder %s39, 1
      %p97 = por %p95, %p96
      %p98 = scmp.ne.s32.totalorder %s87, %s88
      %p99 = scmp.eq.s32.totalorder %s39, 0
      %p100 = por %p98, %p99
      %p101 = scmp.ne.s32.totalorder %s87, %s88
      %p102 = scmp.eq.s32.totalorder %s40, 1
      %p103 = por %p101, %p102
      %p105 = scmp.ne.s32.totalorder %s88, %s104
      %p106 = scmp.eq.s32.totalorder %s40, 0
      %p107 = por %p105, %p106
      %s108 = ssub.s32 %s41, %s53
      %p109 = scmp.eq.s32.totalorder %s108, 0
      %s111 = sadd.s32 %s110, 1
      %s112 = scalar_select %p109, %s110, %s111
      %p115 = pneg %p109
      %p116 = scmp.eq.s32.totalorder %s34, 1
      %p117 = por %p115, %p116
      %p118 = scmp.ne.s32.totalorder %s110, %s113
      %p119 = scmp.eq.s32.totalorder %s34, 0
      %p120 = por %p118, %p119
      %p121 = scmp.ne.s32.totalorder %s110, %s113
      %p122 = scmp.eq.s32.totalorder %s39, 1
      %p123 = por %p121, %p122
      %p124 = scmp.ne.s32.totalorder %s113, %s114
      %p125 = scmp.eq.s32.totalorder %s39, 0
      %p126 = por %p124, %p125
      %p127 = scmp.ne.s32.totalorder %s113, %s114
      %p128 = scmp.eq.s32.totalorder %s40, 1
      %p129 = por %p127, %p128
      %p131 = scmp.ne.s32.totalorder %s114, %s130
      %p132 = scmp.eq.s32.totalorder %s40, 0
      %p133 = por %p131, %p132
      %s134 = ssub.s32 %s41, %s53
      %p135 = scmp.eq.s32.totalorder %s134, 0
      %s137 = sadd.s32 %s136, 1
      %s138 = scalar_select %p135, %s136, %s137
      %p141 = pneg %p135
      %p142 = scmp.eq.s32.totalorder %s34, 1
      %p143 = por %p141, %p142
      %p144 = scmp.ne.s32.totalorder %s136, %s139
      %p145 = scmp.eq.s32.totalorder %s34, 0
      %p146 = por %p144, %p145
      %p147 = scmp.ne.s32.totalorder %s136, %s139
      %p148 = scmp.eq.s32.totalorder %s39, 1
      %p149 = por %p147, %p148
      %p150 = scmp.ne.s32.totalorder %s139, %s140
      %p151 = scmp.eq.s32.totalorder %s39, 0
      %p152 = por %p150, %p151
      %p153 = scmp.ne.s32.totalorder %s139, %s140
      %p154 = scmp.eq.s32.totalorder %s40, 1
      %p155 = por %p153, %p154
      %p157 = scmp.ne.s32.totalorder %s140, %s156
      %p158 = scmp.eq.s32.totalorder %s40, 0
      %p159 = por %p157, %p158
      %s160 = ssub.s32 %s41, %s53
      %p161 = scmp.eq.s32.totalorder %s160, 0
      %s163 = sadd.s32 %s162, 1
      %s164 = scalar_select %p161, %s162, %s163
      %p167 = pneg %p161
      %p168 = scmp.eq.s32.totalorder %s34, 1
      %p169 = por %p167, %p168
      %p170 = scmp.ne.s32.totalorder %s162, %s165
      %p171 = scmp.eq.s32.totalorder %s34, 0
      %p172 = por %p170, %p171
      %p173 = scmp.ne.s32.totalorder %s162, %s165
      %p174 = scmp.eq.s32.totalorder %s39, 1
      %p175 = por %p173, %p174
      %p176 = scmp.ne.s32.totalorder %s165, %s166
      %p177 = scmp.eq.s32.totalorder %s39, 0
      %p178 = por %p176, %p177
      %p179 = scmp.ne.s32.totalorder %s165, %s166
      %p180 = scmp.eq.s32.totalorder %s40, 1
      %p181 = por %p179, %p180
      %p183 = scmp.ne.s32.totalorder %s166, %s182
      %p184 = scmp.eq.s32.totalorder %s40, 0
      %p185 = por %p183, %p184
      %s186 = ssub.s32 %s41, %s53
      %p187 = scmp.eq.s32.totalorder %s186, 0
      %s189 = sadd.s32 %s188, 1
      %s190 = scalar_select %p187, %s188, %s189
      %p193 = pneg %p187
      %p194 = scmp.eq.s32.totalorder %s34, 1
      %p195 = por %p193, %p194
      %p196 = scmp.ne.s32.totalorder %s188, %s191
      %p197 = scmp.eq.s32.totalorder %s34, 0
      %p198 = por %p196, %p197
      %p199 = scmp.ne.s32.totalorder %s188, %s191
      %p200 = scmp.eq.s32.totalorder %s39, 1
      %p201 = por %p199, %p200
      %p202 = scmp.ne.s32.totalorder %s191, %s192
      %p203 = scmp.eq.s32.totalorder %s39, 0
      %p204 = por %p202, %p203
      %p205 = scmp.ne.s32.totalorder %s191, %s192
      %p206 = scmp.eq.s32.totalorder %s40, 1
      %p207 = por %p205, %p206
      %p209 = scmp.ne.s32.totalorder %s192, %s208
      %p210 = scmp.eq.s32.totalorder %s40, 0
      %p211 = por %p209, %p210
      %s212 = ssub.s32 %s41, %s53
      %s213 = ssub.s32 %s42, %s49
      %s214 = sor.u32 %s212, %s213
      %p215 = scmp.eq.s32.totalorder %s214, 0
      %s217 = sadd.s32 %s216, 1
      %s218 = scalar_select %p215, %s216, %s217
      %p221 = pneg %p215
      %p222 = scmp.eq.s32.totalorder %s34, 1
      %p223 = por %p221, %p222
      %p224 = scmp.ne.s32.totalorder %s216, %s219
      %p225 = scmp.eq.s32.totalorder %s34, 0
      %p226 = por %p224, %p225
      %p227 = scmp.ne.s32.totalorder %s216, %s219
      %p228 = scmp.eq.s32.totalorder %s39, 1
      %p229 = por %p227, %p228
      %p230 = scmp.ne.s32.totalorder %s219, %s220
      %p231 = scmp.eq.s32.totalorder %s39, 0
      %p232 = por %p230, %p231
      %p233 = scmp.ne.s32.totalorder %s219, %s220
      %p234 = scmp.eq.s32.totalorder %s40, 1
      %p235 = por %p233, %p234
      %p237 = scmp.ne.s32.totalorder %s220, %s236
      %p238 = scmp.eq.s32.totalorder %s40, 0
      %p239 = por %p237, %p238
      %s240 = ssub.s32 %s41, %s53
      %s241 = ssub.s32 %s42, %s49
      %s242 = sor.u32 %s240, %s241
      %p243 = scmp.eq.s32.totalorder %s242, 0
      %s245 = sadd.s32 %s244, 1
      %s246 = scalar_select %p243, %s244, %s245
      %p249 = pneg %p243
      %p250 = scmp.eq.s32.totalorder %s34, 1
      %p251 = por %p249, %p250
      %p252 = scmp.ne.s32.totalorder %s244, %s247
      %p253 = scmp.eq.s32.totalorder %s34, 0
      %p254 = por %p252, %p253
      %p255 = scmp.ne.s32.totalorder %s244, %s247
      %p256 = scmp.eq.s32.totalorder %s39, 1
      %p257 = por %p255, %p256
      %p258 = scmp.ne.s32.totalorder %s247, %s248
      %p259 = scmp.eq.s32.totalorder %s39, 0
      %p260 = por %p258, %p259
      %p261 = scmp.ne.s32.totalorder %s247, %s248
      %p262 = scmp.eq.s32.totalorder %s40, 1
      %p263 = por %p261, %p262
      %p265 = scmp.ne.s32.totalorder %s248, %s264
      %p266 = scmp.eq.s32.totalorder %s40, 0
      %p267 = por %p265, %p266
      %p268 = scmp.le.s32.totalorder 1, %s34
      %p269 = scmp.lt.s32.totalorder %s34, 3
      %p270 = pnand %p268, %p269
      %p271 = pneg %p270
      // Predicated region
      $region9: #{tpu_custom_call.1} parent=5 // pred_check
        _
      $region10: #{tpu_custom_call.1} parent=5 // pred_check_branch
        %273 = sbr.rel (%p270) target = $region12
      $region11: #{tpu_custom_call.1} parent=5 // pred_region
        %s274 = ssub.s32 %s34, 1
      $region12: #{tpu_custom_call.1} parent=5 // pred_fallthru
        _
      %p275 = scmp.lt.s32.totalorder %s34, 2
      // Predicated region
      $region13: #{tpu_custom_call.1} parent=5 // pred_check
        %p276 = pneg %p275
      $region14: #{tpu_custom_call.1} parent=5 // pred_check_branch
        %278 = sbr.rel (%p276) target = $region16
      $region15: #{tpu_custom_call.1} parent=5 // pred_region
        // Predicated region
        $region17: #{tpu_custom_call.1} parent=15 // pred_check
          %p279 = pneg %p68
        $region18: #{tpu_custom_call.1} parent=15 // pred_check_branch
          %281 = sbr.rel (%p279) target = $region20
        $region19: #{tpu_custom_call.1} parent=15 // pred_region
          %s282 = sand.u32 %s58, 1
          %s283 = scalar_lea.sflag [#allocation5], %s282
          %s284 = sand.u32 %s58, 1
          %s285 = smul.addr %s284, 64
          %s286 = scalar_lea.vmem [#allocation4], %s285
          %s287 = smul.u32 8, %s42
          %s289 = ssub.s32 1024, 1024
          %290 = vsyncadd %s283, %s289
          %s291 = smul.addr %s287, 2
          %s292 = smul.addr %s41, 16
          %s293 = sadd.s32 %s291, %s292
          %s294 = smul.addr %s293, 64
          %s295 = scalar_lea.hbm %s1, %s294
          %s296 = sshll.u32 %s286, 4
          %s297 = int_to_ptr.vmem [resolvable:$true] %s296
          %302 = dma.hbm_to_vmem [thread:$0]  %s295, 1024, %s297, %s283, 128, 128, 8
        $region20: #{tpu_custom_call.1} parent=15 // pred_fallthru
          _
        // Predicated region
        $region21: #{tpu_custom_call.1} parent=15 // pred_check
          %p303 = pneg %p94
        $region22: #{tpu_custom_call.1} parent=15 // pred_check_branch
          %305 = sbr.rel (%p303) target = $region24
        $region23: #{tpu_custom_call.1} parent=15 // pred_region
          %s306 = sand.u32 %s34, 1
          %s307 = scalar_lea.sflag [#allocation8], %s306
          %s308 = sand.u32 %s84, 1
          %s309 = smul.addr %s308, 128
          %s310 = scalar_lea.vmem [#allocation7], %s309
          %s312 = ssub.s32 2048, 2048
          %313 = vsyncadd %s307, %s312
          %s314 = smul.addr %s41, 32
          %s315 = smul.addr %s314, 64
          %s316 = scalar_lea.hbm %s2, %s315
          %s317 = sshll.u32 %s310, 4
          %s318 = int_to_ptr.vmem [resolvable:$true] %s317
          %323 = dma.hbm_to_vmem [thread:$0]  %s316, 2048, %s318, %s307, 64, 64, 4
        $region24: #{tpu_custom_call.1} parent=15 // pred_fallthru
          _
        // Predicated region
        $region25: #{tpu_custom_call.1} parent=15 // pred_check
          %p324 = pneg %p120
        $region26: #{tpu_custom_call.1} parent=15 // pred_check_branch
          %326 = sbr.rel (%p324) target = $region28
        $region27: #{tpu_custom_call.1} parent=15 // pred_region
          %p327 = scmp.lt.s32.totalorder %s41, 1
          %s328 = scalar_select %p327, %s41, 1
          %s329 = scalar_lea.vmem %s3, %s328
        $region28: #{tpu_custom_call.1} parent=15 // pred_fallthru
          _
        // Predicated region
        $region29: #{tpu_custom_call.1} parent=15 // pred_check
          %p330 = pneg %p146
        $region30: #{tpu_custom_call.1} parent=15 // pred_check_branch
          %332 = sbr.rel (%p330) target = $region32
        $region31: #{tpu_custom_call.1} parent=15 // pred_region
          %s333 = sand.u32 %s34, 1
          %s334 = scalar_lea.sflag [#allocation8], %s333
          %s335 = sand.u32 %s136, 1
          %s336 = smul.addr %s335, 128
          %s337 = scalar_lea.vmem [#allocation9], %s336
          %s339 = ssub.s32 2048, 2048
          %340 = vsyncadd %s334, %s339
          %s341 = smul.addr %s41, 32
          %s342 = smul.addr %s341, 64
          %s343 = scalar_lea.hbm %s4, %s342
          %s344 = sshll.u32 %s337, 4
          %s345 = int_to_ptr.vmem [resolvable:$true] %s344
          %350 = dma.hbm_to_vmem [thread:$0]  %s343, 2048, %s345, %s334, 128, 128, 8
        $region32: #{tpu_custom_call.1} parent=15 // pred_fallthru
          _
        // Predicated region
        $region33: #{tpu_custom_call.1} parent=15 // pred_check
          %p351 = pneg %p172
        $region34: #{tpu_custom_call.1} parent=15 // pred_check_branch
          %353 = sbr.rel (%p351) target = $region36
        $region35: #{tpu_custom_call.1} parent=15 // pred_region
          %s354 = sand.u32 %s162, 1
          %s355 = scalar_lea.sflag [#allocation11], %s354
          %s356 = sand.u32 %s162, 1
          %s357 = smul.addr %s356, 128
          %s358 = scalar_lea.vmem [#allocation10], %s357
          %s360 = ssub.s32 2048, 2048
          %361 = vsyncadd %s355, %s360
          %s362 = smul.addr %s41, 32
          %s363 = smul.addr %s362, 64
          %s364 = scalar_lea.hbm %s5, %s363
          %s365 = sshll.u32 %s358, 4
          %s366 = int_to_ptr.vmem [resolvable:$true] %s365
          %371 = dma.hbm_to_vmem [thread:$0]  %s364, 2048, %s366, %s355, 64, 64, 4
        $region36: #{tpu_custom_call.1} parent=15 // pred_fallthru
          _
        // Predicated region
        $region37: #{tpu_custom_call.1} parent=15 // pred_check
          %p372 = pneg %p198
        $region38: #{tpu_custom_call.1} parent=15 // pred_check_branch
          %374 = sbr.rel (%p372) target = $region40
        $region39: #{tpu_custom_call.1} parent=15 // pred_region
          %p375 = scmp.lt.s32.totalorder %s41, 1
          %s376 = scalar_select %p375, %s41, 1
          %s377 = scalar_lea.vmem %s6, %s376
        $region40: #{tpu_custom_call.1} parent=15 // pred_fallthru
          _
      $region16: #{tpu_custom_call.1} parent=5 // pred_fallthru
        _
      %p378 = scmp.le.s32.totalorder 1, %s34
      %p379 = scmp.lt.s32.totalorder %s34, 3
      %p380 = pnand %p378, %p379
      %p381 = pneg %p380
      // Predicated region
      $region41: #{tpu_custom_call.1} parent=5 // pred_check
        _
      $region42: #{tpu_custom_call.1} parent=5 // pred_check_branch
        %383 = sbr.rel (%p380) target = $region44
      $region43: #{tpu_custom_call.1} parent=5 // pred_region
        %s384 = ssub.s32 %s34, 1
        %s385 = sand.u32 %s61, 1
        %s386 = scalar_lea.sflag [#allocation5], %s385
        %s387 = sand.u32 %s61, 1
        %s388 = smul.addr %s387, 64
        %s389 = scalar_lea.vmem [#allocation4], %s388
        // Predicated region
        $region45: #{tpu_custom_call.1} parent=43 // pred_check
          %p390 = pneg %p74
        $region46: #{tpu_custom_call.1} parent=43 // pred_check_branch
          %392 = sbr.rel (%p390) target = $region48
        $region47: #{tpu_custom_call.1} parent=43 // pred_region
          %393 = dma.done %s386, 1024
        $region48: #{tpu_custom_call.1} parent=43 // pred_fallthru
          _
        %s394 = sand.u32 %s39, 1
        %s395 = scalar_lea.sflag [#allocation8], %s394
        %s396 = sand.u32 %s87, 1
        %s397 = smul.addr %s396, 128
        %s398 = scalar_lea.vmem [#allocation7], %s397
        // Predicated region
        $region49: #{tpu_custom_call.1} parent=43 // pred_check
          %p399 = pneg %p100
        $region50: #{tpu_custom_call.1} parent=43 // pred_check_branch
          %401 = sbr.rel (%p399) target = $region52
        $region51: #{tpu_custom_call.1} parent=43 // pred_region
          %402 = dma.done %s395, 2048
        $region52: #{tpu_custom_call.1} parent=43 // pred_fallthru
          _
        %s403 = sand.u32 %s39, 1
        %s404 = scalar_lea.sflag [#allocation8], %s403
        %s405 = sand.u32 %s139, 1
        %s406 = smul.addr %s405, 128
        %s407 = scalar_lea.vmem [#allocation9], %s406
        // Predicated region
        $region53: #{tpu_custom_call.1} parent=43 // pred_check
          %p408 = pneg %p152
        $region54: #{tpu_custom_call.1} parent=43 // pred_check_branch
          %410 = sbr.rel (%p408) target = $region56
        $region55: #{tpu_custom_call.1} parent=43 // pred_region
          %411 = dma.done %s404, 2048
        $region56: #{tpu_custom_call.1} parent=43 // pred_fallthru
          _
        %s412 = sand.u32 %s165, 1
        %s413 = scalar_lea.sflag [#allocation11], %s412
        %s414 = sand.u32 %s165, 1
        %s415 = smul.addr %s414, 128
        %s416 = scalar_lea.vmem [#allocation10], %s415
        // Predicated region
        $region57: #{tpu_custom_call.1} parent=43 // pred_check
          %p417 = pneg %p178
        $region58: #{tpu_custom_call.1} parent=43 // pred_check_branch
          %419 = sbr.rel (%p417) target = $region60
        $region59: #{tpu_custom_call.1} parent=43 // pred_region
          %420 = dma.done %s413, 2048
        $region60: #{tpu_custom_call.1} parent=43 // pred_fallthru
          _
        %s421 = sand.u32 %s61, 1
        %s422 = scalar_lea.sflag [#allocation5], %s421
        %s423 = sand.u32 %s61, 1
        %s424 = smul.addr %s423, 64
        %s425 = scalar_lea.vmem [#allocation4], %s424
        %p426 = pneg %p74
        %p427 = pneg %p71
        %s428 = sand.u32 %s39, 1
        %s429 = scalar_lea.sflag [#allocation8], %s428
        %s430 = sand.u32 %s87, 1
        %s431 = smul.addr %s430, 128
        %s432 = scalar_lea.vmem [#allocation7], %s431
        %p433 = pneg %p100
        %p434 = pneg %p97
        %p435 = scmp.lt.s32.totalorder %s43, 1
        %s436 = scalar_select %p435, %s43, 1
        %s437 = scalar_lea.vmem %s3, %s436
        %p438 = pneg %p126
        %p439 = pneg %p123
        %s440 = sand.u32 %s39, 1
        %s441 = scalar_lea.sflag [#allocation8], %s440
        %s442 = sand.u32 %s139, 1
        %s443 = smul.addr %s442, 128
        %s444 = scalar_lea.vmem [#allocation9], %s443
        %p445 = pneg %p152
        %p446 = pneg %p149
        %s447 = sand.u32 %s165, 1
        %s448 = scalar_lea.sflag [#allocation11], %s447
        %s449 = sand.u32 %s165, 1
        %s450 = smul.addr %s449, 128
        %s451 = scalar_lea.vmem [#allocation10], %s450
        %p452 = pneg %p178
        %p453 = pneg %p175
        %p454 = scmp.lt.s32.totalorder %s43, 1
        %s455 = scalar_select %p454, %s43, 1
        %s456 = scalar_lea.vmem %s6, %s455
        %p457 = pneg %p204
        %p458 = pneg %p201
        %p459 = pneg %p232
        %p460 = pneg %p229
        %s461 = sand.u32 %s219, 1
        %s462 = scalar_lea.sflag [#allocation6], %s461
        %s463 = sand.u32 %s219, 1
        %s464 = smul.addr %s463, 16
        %s465 = scalar_lea.vmem [#allocation12], %s464
        %p466 = pneg %p260
        %p467 = pneg %p257
        %s468 = sand.u32 %s247, 1
        %s469 = scalar_lea.sflag [#allocation14], %s468
        %s470 = sand.u32 %s247, 1
        %s471 = smul.addr %s470, 8
        %s472 = scalar_lea.vmem [#allocation13], %s471
        %s473 = smul.u32 8, %s44
        %p474 = scmp.lt.s32.totalorder %s43, 1
        %s475 = scalar_select %p474, %s43, 1
        %s476 = scalar_lea.vmem %s3, %s475
        %p477 = scmp.lt.s32.totalorder %s43, 1
        %s478 = scalar_select %p477, %s43, 1
        %s479 = scalar_lea.vmem %s6, %s478
        %s481 = sld [smem:[#allocation3 + %s43]]
        %v482 = vld [vmem:[%s389] sm:$0xff]
        %v483 = vld [vmem:[%s389 + $0x8] sm:$0xff]
        %v484 = vld [vmem:[%s389 + $0x10] sm:$0xff]
        %v485 = vld [vmem:[%s389 + $0x18] sm:$0xff]
        %v486 = vld [vmem:[%s389 + $0x20] sm:$0xff]
        %v487 = vld [vmem:[%s389 + $0x28] sm:$0xff]
        %v488 = vld [vmem:[%s389 + $0x30] sm:$0xff]
        %v489 = vld [vmem:[%s389 + $0x38] sm:$0xff]
        %v490 = vld [vmem:[%s398] sm:$0xf]
        %v491 = vld [vmem:[%s398 + $0x4] sm:$0xf]
        %v492 = vld [vmem:[%s398 + $0x8] sm:$0xf]
        %v493 = vld [vmem:[%s398 + $0xc] sm:$0xf]
        %v494 = vld [vmem:[%s398 + $0x10] sm:$0xf]
        %v495 = vld [vmem:[%s398 + $0x14] sm:$0xf]
        %v496 = vld [vmem:[%s398 + $0x18] sm:$0xf]
        %v497 = vld [vmem:[%s398 + $0x1c] sm:$0xf]
        %v498 = vld [vmem:[%s398 + $0x20] sm:$0xf]
        %v499 = vld [vmem:[%s398 + $0x24] sm:$0xf]
        %v500 = vld [vmem:[%s398 + $0x28] sm:$0xf]
        %v501 = vld [vmem:[%s398 + $0x2c] sm:$0xf]
        %v502 = vld [vmem:[%s398 + $0x30] sm:$0xf]
        %v503 = vld [vmem:[%s398 + $0x34] sm:$0xf]
        %v504 = vld [vmem:[%s398 + $0x38] sm:$0xf]
        %v505 = vld [vmem:[%s398 + $0x3c] sm:$0xf]
        %v506 = vld [vmem:[%s398 + $0x40] sm:$0xf]
        %v507 = vld [vmem:[%s398 + $0x44] sm:$0xf]
        %v508 = vld [vmem:[%s398 + $0x48] sm:$0xf]
        %v509 = vld [vmem:[%s398 + $0x4c] sm:$0xf]
        %v510 = vld [vmem:[%s398 + $0x50] sm:$0xf]
        %v511 = vld [vmem:[%s398 + $0x54] sm:$0xf]
        %v512 = vld [vmem:[%s398 + $0x58] sm:$0xf]
        %v513 = vld [vmem:[%s398 + $0x5c] sm:$0xf]
        %v514 = vld [vmem:[%s398 + $0x60] sm:$0xf]
        %v515 = vld [vmem:[%s398 + $0x64] sm:$0xf]
        %v516 = vld [vmem:[%s398 + $0x68] sm:$0xf]
        %v517 = vld [vmem:[%s398 + $0x6c] sm:$0xf]
        %v518 = vld [vmem:[%s398 + $0x70] sm:$0xf]
        %v519 = vld [vmem:[%s398 + $0x74] sm:$0xf]
        %v520 = vld [vmem:[%s398 + $0x78] sm:$0xf]
        %v521 = vld [vmem:[%s398 + $0x7c] sm:$0xf]
        %v522 = vld [vmem:[%s476] sm:$0x1]
        %v524 = vlaneseq
        %v525 = vshrl.u32 %v524, 7
        %v526 = vsub.s32 0, %v525
        %v527 = vrot.slane %v522, %v526
        %v537 = vunpack.c.l.b16 %v482
        %v538 = vunpack.c.h.b16 %v482
        %v539 = vunpack.c.l.b16 %v483
        %v540 = vunpack.c.h.b16 %v483
        %v541 = vunpack.c.l.b16 %v484
        %v542 = vunpack.c.h.b16 %v484
        %v543 = vunpack.c.l.b16 %v485
        %v544 = vunpack.c.h.b16 %v485
        %v545 = vunpack.c.l.b16 %v486
        %v546 = vunpack.c.h.b16 %v486
        %v547 = vunpack.c.l.b16 %v487
        %v548 = vunpack.c.h.b16 %v487
        %v549 = vunpack.c.l.b16 %v488
        %v550 = vunpack.c.h.b16 %v488
        %v551 = vunpack.c.l.b16 %v489
        %v552 = vunpack.c.h.b16 %v489
        %v553 = vpack.c.b16 %v539, %v537
        %v554 = vpack.c.b16 %v540, %v538
        %v555 = vpack.c.b16 %v543, %v541
        %v556 = vpack.c.b16 %v544, %v542
        %v557 = vpack.c.b16 %v547, %v545
        %v558 = vpack.c.b16 %v548, %v546
        %v559 = vpack.c.b16 %v551, %v549
        %v560 = vpack.c.b16 %v552, %v550
        %v601 = vunpack.c.l.b16 %v490
        %v602 = vunpack.c.l.b16 %v491
        %v603 = vunpack.c.l.b16 %v492
        %v604 = vunpack.c.l.b16 %v493
        %v605 = vunpack.c.l.b16 %v494
        %v606 = vunpack.c.l.b16 %v495
        %v607 = vunpack.c.l.b16 %v496
        %v608 = vunpack.c.l.b16 %v497
        %v609 = vunpack.c.l.b16 %v498
        %v610 = vunpack.c.l.b16 %v499
        %v611 = vunpack.c.l.b16 %v500
        %v612 = vunpack.c.l.b16 %v501
        %v613 = vunpack.c.l.b16 %v502
        %v614 = vunpack.c.l.b16 %v503
        %v615 = vunpack.c.l.b16 %v504
        %v616 = vunpack.c.l.b16 %v505
        %v617 = vunpack.c.l.b16 %v506
        %v618 = vunpack.c.l.b16 %v507
        %v619 = vunpack.c.l.b16 %v508
        %v620 = vunpack.c.l.b16 %v509
        %v621 = vunpack.c.l.b16 %v510
        %v622 = vunpack.c.l.b16 %v511
        %v623 = vunpack.c.l.b16 %v512
        %v624 = vunpack.c.l.b16 %v513
        %v625 = vunpack.c.l.b16 %v514
        %v626 = vunpack.c.l.b16 %v515
        %v627 = vunpack.c.l.b16 %v516
        %v628 = vunpack.c.l.b16 %v517
        %v629 = vunpack.c.l.b16 %v518
        %v630 = vunpack.c.l.b16 %v519
        %v631 = vunpack.c.l.b16 %v520
        %v632 = vunpack.c.l.b16 %v521
        %v633 = vpack.c.b16 %v602, %v601
        %v634 = vpack.c.b16 %v604, %v603
        %v635 = vpack.c.b16 %v606, %v605
        %v636 = vpack.c.b16 %v608, %v607
        %v637 = vpack.c.b16 %v610, %v609
        %v638 = vpack.c.b16 %v612, %v611
        %v639 = vpack.c.b16 %v614, %v613
        %v640 = vpack.c.b16 %v616, %v615
        %v641 = vpack.c.b16 %v618, %v617
        %v642 = vpack.c.b16 %v620, %v619
        %v643 = vpack.c.b16 %v622, %v621
        %v644 = vpack.c.b16 %v624, %v623
        %v645 = vpack.c.b16 %v626, %v625
        %v646 = vpack.c.b16 %v628, %v627
        %v647 = vpack.c.b16 %v630, %v629
        %v648 = vpack.c.b16 %v632, %v631
        %665 = vmatprep.subr.bf16.mxu0 0
        %666 = vmatpush1.bf16.msra.mxu0 %v633
        %667 = vmatprep.subr.bf16.mxu0 0
        %668 = vmatpush1.bf16.msra.mxu0 %v634
        %669 = vmatprep.subr.bf16.mxu0 0
        %670 = vmatpush1.bf16.msra.mxu0 %v635
        %671 = vmatprep.subr.bf16.mxu0 0
        %672 = vmatpush1.bf16.msra.mxu0 %v636
        %673 = vmatprep.subr.bf16.mxu0 0
        %674 = vmatpush1.bf16.msra.mxu0 %v637
        %675 = vmatprep.subr.bf16.mxu0 0
        %676 = vmatpush1.bf16.msra.mxu0 %v638
        %677 = vmatprep.subr.bf16.mxu0 0
        %678 = vmatpush1.bf16.msra.mxu0 %v639
        %679 = vmatprep.subr.bf16.mxu0 0
        %680 = vmatpush1.bf16.msra.mxu0 %v640
        %681 = vmatprep.subr.bf16.mxu0 0
        %682 = vmatpush1.bf16.msra.mxu0 %v641
        %683 = vmatprep.subr.bf16.mxu0 0
        %684 = vmatpush1.bf16.msra.mxu0 %v642
        %685 = vmatprep.subr.bf16.mxu0 0
        %686 = vmatpush1.bf16.msra.mxu0 %v643
        %687 = vmatprep.subr.bf16.mxu0 0
        %688 = vmatpush1.bf16.msra.mxu0 %v644
        %689 = vmatprep.subr.bf16.mxu0 0
        %690 = vmatpush1.bf16.msra.mxu0 %v645
        %691 = vmatprep.subr.bf16.mxu0 0
        %692 = vmatpush1.bf16.msra.mxu0 %v646
        %693 = vmatprep.subr.bf16.mxu0 0
        %694 = vmatpush1.bf16.msra.mxu0 %v647
        %695 = vmatprep.subr.bf16.mxu0 0
        %696 = vmatpush1.bf16.msra.mxu0 %v648
        %697 = vmatprep.mubr.bf16.mxu0 %v554
        %698 = vmatmul.mubr.bf16.gmra.mrb[0].mxu0 %v553
        %v699 = vpop.f32.mrb[0].mxu0
        %v700 = vadd.f32 %v527, %v699
        %v701 = vpop.f32.mrb[0].mxu0
        %v702 = vpop.f32.mrb[0].mxu0
        %v703 = vadd.f32 %v527, %v702
        %v704 = vpop.f32.mrb[0].mxu0
        %705 = vmatprep.mubr.bf16.mxu0 %v556
        %706 = vmatmul.mubr.bf16.gmra.mrb[0].mxu0 %v555
        %v707 = vpop.f32.mrb[0].mxu0
        %v708 = vadd.f32 %v527, %v707
        %v709 = vpop.f32.mrb[0].mxu0
        %v710 = vpop.f32.mrb[0].mxu0
        %v711 = vadd.f32 %v527, %v710
        %v712 = vpop.f32.mrb[0].mxu0
        %713 = vmatprep.mubr.bf16.mxu0 %v558
        %714 = vmatmul.mubr.bf16.gmra.mrb[0].mxu0 %v557
        %v715 = vpop.f32.mrb[0].mxu0
        %v716 = vadd.f32 %v527, %v715
        %v717 = vpop.f32.mrb[0].mxu0
        %v718 = vpop.f32.mrb[0].mxu0
        %v719 = vadd.f32 %v527, %v718
        %v720 = vpop.f32.mrb[0].mxu0
        %721 = vmatprep.mubr.bf16.mxu0 %v560
        %722 = vmatmul.mubr.bf16.gmra.mrb[0].mxu0 %v559
        %v723 = vpop.f32.mrb[0].mxu0
        %v724 = vadd.f32 %v527, %v723
        %v725 = vpop.f32.mrb[0].mxu0
        %v726 = vpop.f32.mrb[0].mxu0
        %v727 = vadd.f32 %v527, %v726
        %v728 = vpop.f32.mrb[0].mxu0
        %729 = vdwg.mxu0
        %v730 = vmul.f32 %v700, %v700
        %v731 = vmul.f32 %v703, %v703
        %v732 = vmul.f32 %v708, %v708
        %v733 = vmul.f32 %v711, %v711
        %v734 = vmul.f32 %v716, %v716
        %v735 = vmul.f32 %v719, %v719
        %v736 = vmul.f32 %v724, %v724
        %v737 = vmul.f32 %v727, %v727
        %v738 = vmul.f32 %v700, %v730
        %v739 = vmul.f32 %v703, %v731
        %v740 = vmul.f32 %v708, %v732
        %v741 = vmul.f32 %v711, %v733
        %v742 = vmul.f32 %v716, %v734
        %v743 = vmul.f32 %v719, %v735
        %v744 = vmul.f32 %v724, %v736
        %v745 = vmul.f32 %v727, %v737
        %v746 = vmul.f32 %v738, 0.044715
        %v747 = vmul.f32 %v739, 0.044715
        %v748 = vmul.f32 %v740, 0.044715
        %v749 = vmul.f32 %v741, 0.044715
        %v750 = vmul.f32 %v742, 0.044715
        %v751 = vmul.f32 %v743, 0.044715
        %v752 = vmul.f32 %v744, 0.044715
        %v753 = vmul.f32 %v745, 0.044715
        %v754 = vadd.f32 %v700, %v746
        %v755 = vadd.f32 %v703, %v747
        %v756 = vadd.f32 %v708, %v748
        %v757 = vadd.f32 %v711, %v749
        %v758 = vadd.f32 %v716, %v750
        %v759 = vadd.f32 %v719, %v751
        %v760 = vadd.f32 %v724, %v752
        %v761 = vadd.f32 %v727, %v753
        %v762 = vmul.f32 %v754, 0.7978846
        %v763 = vmul.f32 %v755, 0.7978846
        %v764 = vmul.f32 %v756, 0.7978846
        %v765 = vmul.f32 %v757, 0.7978846
        %v766 = vmul.f32 %v758, 0.7978846
        %v767 = vmul.f32 %v759, 0.7978846
        %v768 = vmul.f32 %v760, 0.7978846
        %v769 = vmul.f32 %v761, 0.7978846
        %v770 = vtanh.pop %v762
        %v771 = vtanh.pop %v763
        %v772 = vtanh.pop %v764
        %v773 = vtanh.pop %v765
        %v774 = vtanh.pop %v766
        %v775 = vtanh.pop %v767
        %v776 = vtanh.pop %v768
        %v777 = vtanh.pop %v769
        %v778 = vadd.f32 %v770, 1.0
        %v779 = vadd.f32 %v771, 1.0
        %v780 = vadd.f32 %v772, 1.0
        %v781 = vadd.f32 %v773, 1.0
        %v782 = vadd.f32 %v774, 1.0
        %v783 = vadd.f32 %v775, 1.0
        %v784 = vadd.f32 %v776, 1.0
        %v785 = vadd.f32 %v777, 1.0
        %v786 = vmul.f32 %v778, 0.5
        %v787 = vmul.f32 %v779, 0.5
        %v788 = vmul.f32 %v780, 0.5
        %v789 = vmul.f32 %v781, 0.5
        %v790 = vmul.f32 %v782, 0.5
        %v791 = vmul.f32 %v783, 0.5
        %v792 = vmul.f32 %v784, 0.5
        %v793 = vmul.f32 %v785, 0.5
        %v794 = vmul.f32 %v700, %v786
        %v795 = vmul.f32 %v703, %v787
        %v796 = vmul.f32 %v708, %v788
        %v797 = vmul.f32 %v711, %v789
        %v798 = vmul.f32 %v716, %v790
        %v799 = vmul.f32 %v719, %v791
        %v800 = vmul.f32 %v724, %v792
        %v801 = vmul.f32 %v727, %v793
        %v802 = vlaneseq
        %v803 = vshrl.u32 %v802, 7
        %v804 = vstv %s481
        %vm805 = vcmp.lt.s32.totalorder %v803, %v804
        %v806 = vsel %vm805, %v794, 0.0
        %v807 = vsel %vm805, %v795, 0.0
        %v808 = vsel %vm805, %v796, 0.0
        %v809 = vsel %vm805, %v797, 0.0
        %v810 = vsel %vm805, %v798, 0.0
        %v811 = vsel %vm805, %v799, 0.0
        %v812 = vsel %vm805, %v800, 0.0
        %v813 = vsel %vm805, %v801, 0.0
        %v814 = vrot.slane %v806, 4
        %v815 = vadd.f32 %v806, %v814
        %v816 = vrot.slane %v815, 2
        %v817 = vadd.f32 %v815, %v816
        %v818 = vrot.slane %v817, 1
        %v819 = vadd.f32 %v817, %v818
        %v820 = vrot.slane %v807, 4
        %v821 = vadd.f32 %v807, %v820
        %v822 = vrot.slane %v821, 2
        %v823 = vadd.f32 %v821, %v822
        %v824 = vrot.slane %v823, 1
        %v825 = vadd.f32 %v823, %v824
        %v826 = vrot.slane %v808, 4
        %v827 = vadd.f32 %v808, %v826
        %v828 = vrot.slane %v827, 2
        %v829 = vadd.f32 %v827, %v828
        %v830 = vrot.slane %v829, 1
        %v831 = vadd.f32 %v829, %v830
        %v832 = vrot.slane %v809, 4
        %v833 = vadd.f32 %v809, %v832
        %v834 = vrot.slane %v833, 2
        %v835 = vadd.f32 %v833, %v834
        %v836 = vrot.slane %v835, 1
        %v837 = vadd.f32 %v835, %v836
        %v838 = vrot.slane %v810, 4
        %v839 = vadd.f32 %v810, %v838
        %v840 = vrot.slane %v839, 2
        %v841 = vadd.f32 %v839, %v840
        %v842 = vrot.slane %v841, 1
        %v843 = vadd.f32 %v841, %v842
        %v844 = vrot.slane %v811, 4
        %v845 = vadd.f32 %v811, %v844
        %v846 = vrot.slane %v845, 2
        %v847 = vadd.f32 %v845, %v846
        %v848 = vrot.slane %v847, 1
        %v849 = vadd.f32 %v847, %v848
        %v850 = vrot.slane %v812, 4
        %v851 = vadd.f32 %v812, %v850
        %v852 = vrot.slane %v851, 2
        %v853 = vadd.f32 %v851, %v852
        %v854 = vrot.slane %v853, 1
        %v855 = vadd.f32 %v853, %v854
        %v856 = vrot.slane %v813, 4
        %v857 = vadd.f32 %v813, %v856
        %v858 = vrot.slane %v857, 2
        %v859 = vadd.f32 %v857, %v858
        %v860 = vrot.slane %v859, 1
        %v861 = vadd.f32 %v859, %v860
        %s862 = scvt.s32.f32 %s481
        %v863 = vstv %s862
        %v864 = vrcp.pop %v863
        %v865 = vmul.f32 %v819, %v864
        %v866 = vmul.f32 %v825, %v864
        %v867 = vmul.f32 %v831, %v864
        %v868 = vmul.f32 %v837, %v864
        %v869 = vmul.f32 %v843, %v864
        %v870 = vmul.f32 %v849, %v864
        %v871 = vmul.f32 %v855, %v864
        %v872 = vmul.f32 %v861, %v864
        %v873 = vpack.c.bf16 %v865, %v865
        %v874 = vpack.c.bf16 %v866, %v866
        %v875 = vpack.c.bf16 %v867, %v867
        %v876 = vpack.c.bf16 %v868, %v868
        %v877 = vpack.c.bf16 %v869, %v869
        %v878 = vpack.c.bf16 %v870, %v870
        %v879 = vpack.c.bf16 %v871, %v871
        %v880 = vpack.c.bf16 %v872, %v872
        %v881 = vld [vmem:[%s407] sm:$0xff]
        %v882 = vld [vmem:[%s407 + $0x8] sm:$0xff]
        %v883 = vld [vmem:[%s407 + $0x10] sm:$0xff]
        %v884 = vld [vmem:[%s407 + $0x18] sm:$0xff]
        %v885 = vld [vmem:[%s407 + $0x20] sm:$0xff]
        %v886 = vld [vmem:[%s407 + $0x28] sm:$0xff]
        %v887 = vld [vmem:[%s407 + $0x30] sm:$0xff]
        %v888 = vld [vmem:[%s407 + $0x38] sm:$0xff]
        %v889 = vld [vmem:[%s407 + $0x40] sm:$0xff]
        %v890 = vld [vmem:[%s407 + $0x48] sm:$0xff]
        %v891 = vld [vmem:[%s407 + $0x50] sm:$0xff]
        %v892 = vld [vmem:[%s407 + $0x58] sm:$0xff]
        %v893 = vld [vmem:[%s407 + $0x60] sm:$0xff]
        %v894 = vld [vmem:[%s407 + $0x68] sm:$0xff]
        %v895 = vld [vmem:[%s407 + $0x70] sm:$0xff]
        %v896 = vld [vmem:[%s407 + $0x78] sm:$0xff]
        %v905 = vunpack.c.l.b16 %v873
        %v906 = vunpack.c.l.b16 %v874
        %v907 = vunpack.c.l.b16 %v875
        %v908 = vunpack.c.l.b16 %v876
        %v909 = vunpack.c.l.b16 %v877
        %v910 = vunpack.c.l.b16 %v878
        %v911 = vunpack.c.l.b16 %v879
        %v912 = vunpack.c.l.b16 %v880
        %vm913 = vcmask 1041409
        %v914 = vsel %vm913, %v906, %v905
        %vm915 = vcmask 1042434
        %v916 = vsel %vm915, %v907, %v914
        %vm917 = vcmask 1043459
        %v918 = vsel %vm917, %v908, %v916
        %vm919 = vcmask 1044484
        %v920 = vsel %vm919, %v909, %v918
        %vm921 = vcmask 1045509
        %v922 = vsel %vm921, %v910, %v920
        %vm923 = vcmask 1046534
        %v924 = vsel %vm923, %v911, %v922
        %vm925 = vcmask 1047559
        %v926 = vsel %vm925, %v912, %v924
        %v927 = vpack.c.b16 %v926, %v926
        %v945 = vunpack.c.l.b16 %v881
        %v946 = vunpack.c.h.b16 %v881
        %v947 = vunpack.c.l.b16 %v882
        %v948 = vunpack.c.h.b16 %v882
        %v949 = vunpack.c.l.b16 %v883
        %v950 = vunpack.c.h.b16 %v883
        %v951 = vunpack.c.l.b16 %v884
        %v952 = vunpack.c.h.b16 %v884
        %v953 = vunpack.c.l.b16 %v885
        %v954 = vunpack.c.h.b16 %v885
        %v955 = vunpack.c.l.b16 %v886
        %v956 = vunpack.c.h.b16 %v886
        %v957 = vunpack.c.l.b16 %v887
        %v958 = vunpack.c.h.b16 %v887
        %v959 = vunpack.c.l.b16 %v888
        %v960 = vunpack.c.h.b16 %v888
        %v961 = vunpack.c.l.b16 %v889
        %v962 = vunpack.c.h.b16 %v889
        %v963 = vunpack.c.l.b16 %v890
        %v964 = vunpack.c.h.b16 %v890
        %v965 = vunpack.c.l.b16 %v891
        %v966 = vunpack.c.h.b16 %v891
        %v967 = vunpack.c.l.b16 %v892
        %v968 = vunpack.c.h.b16 %v892
        %v969 = vunpack.c.l.b16 %v893
        %v970 = vunpack.c.h.b16 %v893
        %v971 = vunpack.c.l.b16 %v894
        %v972 = vunpack.c.h.b16 %v894
        %v973 = vunpack.c.l.b16 %v895
        %v974 = vunpack.c.h.b16 %v895
        %v975 = vunpack.c.l.b16 %v896
        %v976 = vunpack.c.h.b16 %v896
        %v977 = vpack.c.b16 %v947, %v945
        %v978 = vpack.c.b16 %v948, %v946
        %v979 = vpack.c.b16 %v951, %v949
        %v980 = vpack.c.b16 %v952, %v950
        %v981 = vpack.c.b16 %v955, %v953
        %v982 = vpack.c.b16 %v956, %v954
        %v983 = vpack.c.b16 %v959, %v957
        %v984 = vpack.c.b16 %v960, %v958
        %v985 = vpack.c.b16 %v963, %v961
        %v986 = vpack.c.b16 %v964, %v962
        %v987 = vpack.c.b16 %v967, %v965
        %v988 = vpack.c.b16 %v968, %v966
        %v989 = vpack.c.b16 %v971, %v969
        %v990 = vpack.c.b16 %v972, %v970
        %v991 = vpack.c.b16 %v975, %v973
        %v992 = vpack.c.b16 %v976, %v974
        %1009 = vmatprep.subr.bf16.mxu0 %v978
        %1010 = vmatpush1.bf16.msra.mxu0 %v977
        %1011 = vmatprep.subr.bf16.mxu0 %v980
        %1012 = vmatpush1.bf16.msra.mxu0 %v979
        %1013 = vmatprep.subr.bf16.mxu0 %v982
        %1014 = vmatpush1.bf16.msra.mxu0 %v981
        %1015 = vmatprep.subr.bf16.mxu0 %v984
        %1016 = vmatpush1.bf16.msra.mxu0 %v983
        %1017 = vmatprep.subr.bf16.mxu0 %v986
        %1018 = vmatpush1.bf16.msra.mxu0 %v985
        %1019 = vmatprep.subr.bf16.mxu0 %v988
        %1020 = vmatpush1.bf16.msra.mxu0 %v987
        %1021 = vmatprep.subr.bf16.mxu0 %v990
        %1022 = vmatpush1.bf16.msra.mxu0 %v989
        %1023 = vmatprep.subr.bf16.mxu0 %v992
        %1024 = vmatpush1.bf16.msra.mxu0 %v991
        %1025 = vmatprep.subr.bf16.mxu0 0
        %1026 = vmatpush1.bf16.msra.mxu0 0
        %1027 = vmatprep.subr.bf16.mxu0 0
        %1028 = vmatpush1.bf16.msra.mxu0 0
        %1029 = vmatprep.subr.bf16.mxu0 0
        %1030 = vmatpush1.bf16.msra.mxu0 0
        %1031 = vmatprep.subr.bf16.mxu0 0
        %1032 = vmatpush1.bf16.msra.mxu0 0
        %1033 = vmatprep.subr.bf16.mxu0 0
        %1034 = vmatpush1.bf16.msra.mxu0 0
        %1035 = vmatprep.subr.bf16.mxu0 0
        %1036 = vmatpush1.bf16.msra.mxu0 0
        %1037 = vmatprep.subr.bf16.mxu0 0
        %1038 = vmatpush1.bf16.msra.mxu0 0
        %1039 = vmatprep.subr.bf16.mxu0 0
        %1040 = vmatpush1.bf16.msra.mxu0 0
        %1041 = vmatprep.mubr.bf16.mxu0 0
        %1042 = vmatmul.mubr.bf16.gmra.mrb[0].mxu0 %v927
        %v1043 = vpop.f32.mrb[0].mxu0
        %v1044 = vadd.f32 0.0, %v1043
        %v1045 = vpop.f32.mrb[0].mxu0
        %v1046 = vadd.f32 0.0, %v1045
        %v1047 = vpop.f32.mrb[0].mxu0
        %v1048 = vpop.f32.mrb[0].mxu0
        %1049 = vdwg.mxu0
        %v1050 = vmul.f32 %v1044, %v1044
        %v1051 = vmul.f32 %v1046, %v1046
        %v1052 = vadd.f32 %v1050, %v1051
        %1053 = vadd.xlane.f32.xlu0 %v1052
        %v1054 = vpop.xlane.xlu0 %1053
        %v1055 = vmax.f32 %v1054, 1e-24
        %v1056 = vrsqrt.pop %v1055
        %v1057 = vmul.f32 %v1044, %v1056
        %v1058 = vmul.f32 %v1046, %v1056
        %1059 = vst [vmem:[%s465] sm:$0xff] %v1057
        %1060 = vst [vmem:[%s465 + $0x8] sm:$0xff] %v1058
        %v1061 = vpack.c.bf16 %v1057, %v1057
        %v1062 = vpack.c.bf16 %v1058, %v1058
        %v1063 = vld [vmem:[%s416] sm:$0xf]
        %v1064 = vld [vmem:[%s416 + $0x4] sm:$0xf]
        %v1065 = vld [vmem:[%s416 + $0x8] sm:$0xf]
        %v1066 = vld [vmem:[%s416 + $0xc] sm:$0xf]
        %v1067 = vld [vmem:[%s416 + $0x10] sm:$0xf]
        %v1068 = vld [vmem:[%s416 + $0x14] sm:$0xf]
        %v1069 = vld [vmem:[%s416 + $0x18] sm:$0xf]
        %v1070 = vld [vmem:[%s416 + $0x1c] sm:$0xf]
        %v1071 = vld [vmem:[%s416 + $0x20] sm:$0xf]
        %v1072 = vld [vmem:[%s416 + $0x24] sm:$0xf]
        %v1073 = vld [vmem:[%s416 + $0x28] sm:$0xf]
        %v1074 = vld [vmem:[%s416 + $0x2c] sm:$0xf]
        %v1075 = vld [vmem:[%s416 + $0x30] sm:$0xf]
        %v1076 = vld [vmem:[%s416 + $0x34] sm:$0xf]
        %v1077 = vld [vmem:[%s416 + $0x38] sm:$0xf]
        %v1078 = vld [vmem:[%s416 + $0x3c] sm:$0xf]
        %v1079 = vld [vmem:[%s416 + $0x40] sm:$0xf]
        %v1080 = vld [vmem:[%s416 + $0x44] sm:$0xf]
        %v1081 = vld [vmem:[%s416 + $0x48] sm:$0xf]
        %v1082 = vld [vmem:[%s416 + $0x4c] sm:$0xf]
        %v1083 = vld [vmem:[%s416 + $0x50] sm:$0xf]
        %v1084 = vld [vmem:[%s416 + $0x54] sm:$0xf]
        %v1085 = vld [vmem:[%s416 + $0x58] sm:$0xf]
        %v1086 = vld [vmem:[%s416 + $0x5c] sm:$0xf]
        %v1087 = vld [vmem:[%s416 + $0x60] sm:$0xf]
        %v1088 = vld [vmem:[%s416 + $0x64] sm:$0xf]
        %v1089 = vld [vmem:[%s416 + $0x68] sm:$0xf]
        %v1090 = vld [vmem:[%s416 + $0x6c] sm:$0xf]
        %v1091 = vld [vmem:[%s416 + $0x70] sm:$0xf]
        %v1092 = vld [vmem:[%s416 + $0x74] sm:$0xf]
        %v1093 = vld [vmem:[%s416 + $0x78] sm:$0xf]
        %v1094 = vld [vmem:[%s416 + $0x7c] sm:$0xf]
        %v1095 = vld [vmem:[%s479] sm:$0x1]
        %v1097 = vlaneseq
        %v1098 = vshrl.u32 %v1097, 7
        %v1099 = vsub.s32 0, %v1098
        %v1100 = vrot.slane %v1095, %v1099
        %v1134 = vunpack.c.l.b16 %v1063
        %v1135 = vunpack.c.l.b16 %v1064
        %v1136 = vunpack.c.l.b16 %v1065
        %v1137 = vunpack.c.l.b16 %v1066
        %v1138 = vunpack.c.l.b16 %v1067
        %v1139 = vunpack.c.l.b16 %v1068
        %v1140 = vunpack.c.l.b16 %v1069
        %v1141 = vunpack.c.l.b16 %v1070
        %v1142 = vunpack.c.l.b16 %v1071
        %v1143 = vunpack.c.l.b16 %v1072
        %v1144 = vunpack.c.l.b16 %v1073
        %v1145 = vunpack.c.l.b16 %v1074
        %v1146 = vunpack.c.l.b16 %v1075
        %v1147 = vunpack.c.l.b16 %v1076
        %v1148 = vunpack.c.l.b16 %v1077
        %v1149 = vunpack.c.l.b16 %v1078
        %v1150 = vunpack.c.l.b16 %v1079
        %v1151 = vunpack.c.l.b16 %v1080
        %v1152 = vunpack.c.l.b16 %v1081
        %v1153 = vunpack.c.l.b16 %v1082
        %v1154 = vunpack.c.l.b16 %v1083
        %v1155 = vunpack.c.l.b16 %v1084
        %v1156 = vunpack.c.l.b16 %v1085
        %v1157 = vunpack.c.l.b16 %v1086
        %v1158 = vunpack.c.l.b16 %v1087
        %v1159 = vunpack.c.l.b16 %v1088
        %v1160 = vunpack.c.l.b16 %v1089
        %v1161 = vunpack.c.l.b16 %v1090
        %v1162 = vunpack.c.l.b16 %v1091
        %v1163 = vunpack.c.l.b16 %v1092
        %v1164 = vunpack.c.l.b16 %v1093
        %v1165 = vunpack.c.l.b16 %v1094
        %v1166 = vpack.c.b16 %v1135, %v1134
        %v1167 = vpack.c.b16 %v1137, %v1136
        %v1168 = vpack.c.b16 %v1139, %v1138
        %v1169 = vpack.c.b16 %v1141, %v1140
        %v1170 = vpack.c.b16 %v1143, %v1142
        %v1171 = vpack.c.b16 %v1145, %v1144
        %v1172 = vpack.c.b16 %v1147, %v1146
        %v1173 = vpack.c.b16 %v1149, %v1148
        %v1174 = vpack.c.b16 %v1151, %v1150
        %v1175 = vpack.c.b16 %v1153, %v1152
        %v1176 = vpack.c.b16 %v1155, %v1154
        %v1177 = vpack.c.b16 %v1157, %v1156
        %v1178 = vpack.c.b16 %v1159, %v1158
        %v1179 = vpack.c.b16 %v1161, %v1160
        %v1180 = vpack.c.b16 %v1163, %v1162
        %v1181 = vpack.c.b16 %v1165, %v1164
        %1198 = vmatprep.subr.bf16.mxu0 0
        %1199 = vmatpush1.bf16.msra.mxu0 %v1166
        %1200 = vmatprep.subr.bf16.mxu0 0
        %1201 = vmatpush1.bf16.msra.mxu0 %v1167
        %1202 = vmatprep.subr.bf16.mxu0 0
        %1203 = vmatpush1.bf16.msra.mxu0 %v1168
        %1204 = vmatprep.subr.bf16.mxu0 0
        %1205 = vmatpush1.bf16.msra.mxu0 %v1169
        %1206 = vmatprep.subr.bf16.mxu0 0
        %1207 = vmatpush1.bf16.msra.mxu0 %v1170
        %1208 = vmatprep.subr.bf16.mxu0 0
        %1209 = vmatpush1.bf16.msra.mxu0 %v1171
        %1210 = vmatprep.subr.bf16.mxu0 0
        %1211 = vmatpush1.bf16.msra.mxu0 %v1172
        %1212 = vmatprep.subr.bf16.mxu0 0
        %1213 = vmatpush1.bf16.msra.mxu0 %v1173
        %1214 = vmatprep.subr.bf16.mxu0 0
        %1215 = vmatpush1.bf16.msra.mxu0 %v1174
        %1216 = vmatprep.subr.bf16.mxu0 0
        %1217 = vmatpush1.bf16.msra.mxu0 %v1175
        %1218 = vmatprep.subr.bf16.mxu0 0
        %1219 = vmatpush1.bf16.msra.mxu0 %v1176
        %1220 = vmatprep.subr.bf16.mxu0 0
        %1221 = vmatpush1.bf16.msra.mxu0 %v1177
        %1222 = vmatprep.subr.bf16.mxu0 0
        %1223 = vmatpush1.bf16.msra.mxu0 %v1178
        %1224 = vmatprep.subr.bf16.mxu0 0
        %1225 = vmatpush1.bf16.msra.mxu0 %v1179
        %1226 = vmatprep.subr.bf16.mxu0 0
        %1227 = vmatpush1.bf16.msra.mxu0 %v1180
        %1228 = vmatprep.subr.bf16.mxu0 0
        %1229 = vmatpush1.bf16.msra.mxu0 %v1181
        %1230 = vmatprep.mubr.bf16.mxu0 %v1062
        %1231 = vmatmul.mubr.bf16.gmra.mrb[0].mxu0 %v1061
        %v1232 = vpop.f32.mrb[0].mxu0
        %v1233 = vadd.f32 %v1100, %v1232
        %v1234 = vpop.f32.mrb[0].mxu0
        %v1235 = vpop.f32.mrb[0].mxu0
        %v1236 = vpop.f32.mrb[0].mxu0
        %1237 = vdwg.mxu0
        %v1238 = vmul.f32 %v1233, %v1233
        %1239 = vadd.xlane.f32.xlu0 %v1238
        %v1240 = vpop.xlane.xlu0 %1239
        %v1241 = vmax.f32 %v1240, 1e-24
        %v1242 = vrsqrt.pop %v1241
        %v1243 = vmul.f32 %v1233, %v1242
        %1244 = vst [vmem:[%s472] sm:$0xff] %v1243
        %s1245 = sand.u32 %s219, 1
        %s1246 = scalar_lea.sflag [#allocation6], %s1245
        %s1247 = sand.u32 %s219, 1
        %s1248 = smul.addr %s1247, 16
        %s1249 = scalar_lea.vmem [#allocation12], %s1248
        %s1250 = sand.u32 %s247, 1
        %s1251 = scalar_lea.sflag [#allocation14], %s1250
        %s1252 = sand.u32 %s247, 1
        %s1253 = smul.addr %s1252, 8
        %s1254 = scalar_lea.vmem [#allocation13], %s1253
        // Predicated region
        $region61: #{tpu_custom_call.1} parent=43 // pred_check
          %p1255 = pneg %p229
        $region62: #{tpu_custom_call.1} parent=43 // pred_check_branch
          %1257 = sbr.rel (%p1255) target = $region64
        $region63: #{tpu_custom_call.1} parent=43 // pred_region
          %s1259 = ssub.s32 256, 256
          %1260 = vsyncadd %s1246, %s1259
          %s1261 = smul.addr %s44, 2
          %s1262 = smul.addr %s43, 2
          %s1263 = sadd.s32 %s1261, %s1262
          %s1264 = smul.addr %s1263, 128
          %s1265 = scalar_lea.hbm %s7, %s1264
          %s1267 = sshll.u32 %s1249, 4
          %s1268 = int_to_ptr.vmem [resolvable:$true] %s1267
          %1270 = dma.vmem_to_hbm [thread:$0]  %s1268, 256, %s1265, %s1246
        $region64: #{tpu_custom_call.1} parent=43 // pred_fallthru
          _
        // Predicated region
        $region65: #{tpu_custom_call.1} parent=43 // pred_check
          %p1271 = pneg %p257
        $region66: #{tpu_custom_call.1} parent=43 // pred_check_branch
          %1273 = sbr.rel (%p1271) target = $region68
        $region67: #{tpu_custom_call.1} parent=43 // pred_region
          %s1275 = ssub.s32 128, 128
          %1276 = vsyncadd %s1251, %s1275
          %s1277 = sadd.s32 %s44, %s43
          %s1278 = smul.addr %s1277, 128
          %s1279 = scalar_lea.hbm %s8, %s1278
          %s1281 = sshll.u32 %s1254, 4
          %s1282 = int_to_ptr.vmem [resolvable:$true] %s1281
          %1284 = dma.vmem_to_hbm [thread:$0]  %s1282, 128, %s1279, %s1251
        $region68: #{tpu_custom_call.1} parent=43 // pred_fallthru
          _
      $region44: #{tpu_custom_call.1} parent=5 // pred_fallthru
        _
      %p1285 = scmp.le.s32.totalorder 2, %s34
      // Predicated region
      $region69: #{tpu_custom_call.1} parent=5 // pred_check
        %p1286 = pneg %p1285
      $region70: #{tpu_custom_call.1} parent=5 // pred_check_branch
        %1288 = sbr.rel (%p1286) target = $region72
      $region71: #{tpu_custom_call.1} parent=5 // pred_region
        %s1289 = ssub.s32 %s34, 2
        // Predicated region
        $region73: #{tpu_custom_call.1} parent=71 // pred_check
          %p1290 = pneg %p235
        $region74: #{tpu_custom_call.1} parent=71 // pred_check_branch
          %1292 = sbr.rel (%p1290) target = $region76
        $region75: #{tpu_custom_call.1} parent=71 // pred_region
          %s1293 = sand.u32 %s220, 1
          %s1294 = scalar_lea.sflag [#allocation6], %s1293
          %s1295 = sand.u32 %s220, 1
          %s1296 = smul.addr %s1295, 16
          %s1297 = scalar_lea.vmem [#allocation12], %s1296
          %1298 = dma.done %s1294, 256
        $region76: #{tpu_custom_call.1} parent=71 // pred_fallthru
          _
        // Predicated region
        $region77: #{tpu_custom_call.1} parent=71 // pred_check
          %p1299 = pneg %p263
        $region78: #{tpu_custom_call.1} parent=71 // pred_check_branch
          %1301 = sbr.rel (%p1299) target = $region80
        $region79: #{tpu_custom_call.1} parent=71 // pred_region
          %s1302 = sand.u32 %s248, 1
          %s1303 = scalar_lea.sflag [#allocation14], %s1302
          %s1304 = sand.u32 %s248, 1
          %s1305 = smul.addr %s1304, 8
          %s1306 = scalar_lea.vmem [#allocation13], %s1305
          %1307 = dma.done %s1303, 128
        $region80: #{tpu_custom_call.1} parent=71 // pred_fallthru
          _
      $region72: #{tpu_custom_call.1} parent=5 // pred_fallthru
        _
    $region6: #{tpu_custom_call.1} parent=1 // loop_footer
      %s38 = sadd.s32 1, %s34
    $region7: #{tpu_custom_call.1} parent=1 // loop_footer_branch
      %33 = sbr.rel target = $region3
    $region8: #{tpu_custom_call.1} parent=1 // loop_exit
      _
    %1308 = vsyncpa [#allocation5], 1
    %s1309 = scalar_lea.sflag [#allocation5], 1
    %1310 = vsyncpa %s1309, 1
    %1311 = vsyncpa [#allocation8], 1
    %s1312 = scalar_lea.sflag [#allocation8], 1
    %1313 = vsyncpa %s1312, 1
    %1314 = vsyncpa [#allocation11], 1
    %s1315 = scalar_lea.sflag [#allocation11], 1
    %1316 = vsyncpa %s1315, 1
    %1317 = vsyncpa [#allocation6], 1
    %s1318 = scalar_lea.sflag [#allocation6], 1
    %1319 = vsyncpa %s1318, 1
    %1320 = vsyncpa [#allocation14], 1
    %s1321 = scalar_lea.sflag [#allocation14], 1
    %1322 = vsyncpa %s1321, 1

</llo_original>
